<compile_context>
chip_gen: v5e
topology: v5e:2x2
jax: 0.10.0
libtpu: 0.0.40
codegen_flags: <defaults>
</compile_context>

<pallas_src>
import jax
import jax.numpy as jnp
from jax import lax
from jax.experimental import pallas as pl
from jax.experimental.pallas import tpu as pltpu

_EPS = 1e-8
_NJ = 23              # joints
_NJP = 24             # joints padded to a multiple of 8 (3 sublane-tiles)
_ENT = 9              # 3x3 rotation entries per joint
_FEAT = _NJ * _ENT    # 207 (logical feature width)
_KPAD = _ENT * _NJP   # 216 (padded contraction width used by the kernel)
_HID = 500
_OUT = 10
_LANE = 128
_TILE_B = 512         # max batch-tile (lane) width; multiple of 128


def _round_up(n, m):
    return (n + m - 1) // m * m


def _pose_encoder_kernel(x_ref, w1_ref, b1_ref, w2_ref, b2_ref, out_ref, f_ref):
    """One batch tile, batch on lanes.

    x_ref : (3, 24, TB)   axis-angle components, joint axis padded with zeros
    w1_ref: (500, 216)    permuted/padded/transposed first Linear weight
    b1_ref: (500, 1)      first bias (lane-broadcast)
    w2_ref: (10, 500)     second Linear weight, transposed
    b2_ref: (10, 1)       second bias (lane-broadcast)
    out_ref: (10, TB)     lane-dense output tile
    f_ref : (216, TB)     VMEM scratch holding the (R - I) feature slab
    """
    rx = x_ref[0]                       # (24, TB)
    ry = x_ref[1]
    rz = x_ref[2]

    # angle = ||r + eps|| (eps added per component, as in the PyTorch code);
    # the *unmodified* components are divided by that angle.
    ax = rx + _EPS
    ay = ry + _EPS
    az = rz + _EPS
    sq = ax * ax + ay * ay + az * az
    inv = lax.rsqrt(sq)                 # EUP; 1 / angle
    angle = sq * inv                    # sqrt(sq) without a second transcendental
    ux = rx * inv
    uy = ry * inv
    uz = rz * inv

    s = jnp.sin(angle)
    omc = 1.0 - jnp.cos(angle)

    # (R - I) entries, R = I + sin*K + (1-cos)*K@K.  Each entry is a clean
    # (24, TB) slab stored at a 24-row offset (full-vreg aligned stores);
    # compute-then-store keeps only ux/uy/uz/s/omc live across the sequence.
    f_ref[0 * _NJP:1 * _NJP, :] = omc * (-(uy * uy + uz * uz))     # R00 - 1
    f_ref[1 * _NJP:2 * _NJP, :] = omc * (ux * uy) - s * uz         # R01
    f_ref[2 * _NJP:3 * _NJP, :] = omc * (ux * uz) + s * uy         # R02
    f_ref[3 * _NJP:4 * _NJP, :] = omc * (ux * uy) + s * uz         # R10
    f_ref[4 * _NJP:5 * _NJP, :] = omc * (-(ux * ux + uz * uz))     # R11 - 1
    f_ref[5 * _NJP:6 * _NJP, :] = omc * (uy * uz) - s * ux         # R12
    f_ref[6 * _NJP:7 * _NJP, :] = omc * (ux * uz) - s * uy         # R20
    f_ref[7 * _NJP:8 * _NJP, :] = omc * (uy * uz) + s * ux         # R21
    f_ref[8 * _NJP:9 * _NJP, :] = omc * (-(ux * ux + uy * uy))     # R22 - 1

    # Single fused K=216 contraction (was 9 accumulated K=23 matmuls).
    h = jnp.dot(w1_ref[...], f_ref[...], preferred_element_type=jnp.float32)
    h = jnp.maximum(h + b1_ref[...], 0.0)                          # (500, TB)
    out = jnp.dot(w2_ref[...], h, preferred_element_type=jnp.float32)
    out_ref[...] = out + b2_ref[...]                               # (10, TB)


def prepare_params(w1, b1, w2, b2):
    """One-time (load-time) parameter prep.

    w1: (207, 500) = torch dense.weight.T, rows ordered [joint*9 + entry].
    Returns:
      w1t: (500, 216)  rows -> hidden, cols -> [entry*24 + joint] with the
                       pad-joint (joint==23) columns zeroed.
      b1c: (500, 1), w2t: (10, 500), b2c: (10, 1)
    """
    w1k = w1.reshape(_NJ, _ENT, _HID).transpose(1, 0, 2)        # (9, 23, 500)
    w1k = jnp.pad(w1k, ((0, 0), (0, _NJP - _NJ), (0, 0)))       # (9, 24, 500)
    w1t = w1k.reshape(_KPAD, _HID).T                            # (500, 216)
    return (jnp.asarray(w1t), b1.reshape(_HID, 1),
            jnp.asarray(w2.T), b2.reshape(_OUT, 1))


@jax.jit
def pose_encoder_10d(x, w1t, b1c, w2t, b2c):
    """x: (B, 69) float32 -> (B, 10) float32.  Params from prepare_params()."""
    B = x.shape[0]
    xj = x.reshape(B, _NJ, 3)

    # Tile so the grid has >=2 steps for moderate B (v7x megacore) while
    # keeping the lane (batch) width a multiple of 128.
    tb = min(_TILE_B, _round_up(max((B + 1) // 2, 1), _LANE))
    bp = _round_up(B, tb)

    # Zero padding is numerically safe: angle ~ sqrt(3)*eps, no NaN/Inf; the
    # pad joint hits zero W1 columns, pad batch columns are sliced away.
    xj = jnp.pad(xj, ((0, bp - B), (0, _NJP - _NJ), (0, 0)))
    x3 = jnp.transpose(xj, (2, 1, 0))           # (3, 24, bp): batch on lanes

    out_t = pl.pallas_call(
        _pose_encoder_kernel,
        out_shape=jax.ShapeDtypeStruct((_OUT, bp), jnp.float32),
        grid=(bp // tb,),
        in_specs=[
            pl.BlockSpec((3, _NJP, tb), lambda i: (0, 0, i)),   # x (per tile)
            pl.BlockSpec((_HID, _KPAD), lambda i: (0, 0)),      # w1 (resident)
            pl.BlockSpec((_HID, 1), lambda i: (0, 0)),          # b1 (resident)
            pl.BlockSpec((_OUT, _HID), lambda i: (0, 0)),       # w2 (resident)
            pl.BlockSpec((_OUT, 1), lambda i: (0, 0)),          # b2 (resident)
        ],
        out_specs=pl.BlockSpec((_OUT, tb), lambda i: (0, i)),   # lane-dense
        scratch_shapes=[pltpu.VMEM((_KPAD, tb), jnp.float32)],
        compiler_params=pltpu.CompilerParams(
            dimension_semantics=("parallel",)),
        cost_estimate=pl.CostEstimate(
            flops=2 * bp * (_KPAD * _HID + _HID * _OUT),
            transcendentals=3 * bp * _NJP,
            bytes_accessed=4 * (3 * bp * _NJP + _HID * _KPAD + _HID
                                + _OUT * _HID + _OUT + _OUT * bp),
        ),
    )(x3, w1t, b1c, w2t, b2c)

    return out_t[:, :B].T


def _reference(x, w1, b1, w2, b2):
    """Pure-JAX mirror of the PyTorch module (unpermuted params)."""
    B = x.shape[0]
    rv = x.reshape(-1, 3)
    angle = jnp.linalg.norm(rv + _EPS, axis=1, keepdims=True)
    d = rv / angle
    cos = jnp.cos(angle)[:, :, None]
    sin = jnp.sin(angle)[:, :, None]
    rxx, ryy, rzz = d[:, 0], d[:, 1], d[:, 2]
    zeros = jnp.zeros_like(rxx)
    K = jnp.stack([zeros, -rzz, ryy, rzz, zeros, -rxx, -ryy, rxx, zeros],
                  axis=1).reshape(-1, 3, 3)
    ident = jnp.eye(3, dtype=x.dtype)[None]
    R = ident + sin * K + (1.0 - cos) * jnp.matmul(K, K)
    feat = (R - jnp.eye(3, dtype=x.dtype)).reshape(B, _FEAT)
    h = jnp.maximum(feat @ w1 + b1, 0.0)
    return h @ w2 + b2


if __name__ == "__main__":
    key = jax.random.PRNGKey(0)
    kx, k1, k2, k3, k4, kx2 = jax.random.split(key, 6)

    # Synthetic parameters (PyTorch shapes: dense 207->500, dense_1 500->10).
    w1 = jax.random.normal(k1, (_FEAT, _HID), dtype=jnp.float32) * 0.05
    b1 = jax.random.normal(k2, (_HID,), dtype=jnp.float32) * 0.01
    w2 = jax.random.normal(k3, (_HID, _OUT), dtype=jnp.float32) * 0.05
    b2 = jax.random.normal(k4, (_OUT,), dtype=jnp.float32) * 0.01
    params = prepare_params(w1, b1, w2, b2)   # done once, not per call

    for B, kk in ((2, kx), (67, kx2)):        # second case exercises padding
        x = jax.random.normal(kk, (B, 69), dtype=jnp.float32) * 0.7
        out = jax.block_until_ready(pose_encoder_10d(x, *params))
        ref = _reference(x, w1, b1, w2, b2)
        assert out.shape == (B, _OUT)
        assert jnp.allclose(out, ref, rtol=1e-4, atol=1e-4), (B, out, ref)

    print("KERNEL_OK")
</pallas_src>

<mosaic_0001>
module attributes {stable_mosaic.version = 11 : i64} {
  func.func @_pose_encoder_kernel(%arg0: i32, %arg1: memref<3x24x128xf32, #tpu.memory_space<vmem>>, %arg2: memref<500x216xf32, #tpu.memory_space<vmem>>, %arg3: memref<500x1xf32, #tpu.memory_space<vmem>>, %arg4: memref<10x500xf32, #tpu.memory_space<vmem>>, %arg5: memref<10x1xf32, #tpu.memory_space<vmem>>, %arg6: memref<10x128xf32, #tpu.memory_space<vmem>>, %arg7: memref<216x128xf32, #tpu.memory_space<vmem>>) attributes {dimension_semantics = [#tpu.dimension_semantics<parallel>], iteration_bounds = array<i64: 1>, scalar_prefetch = 0 : i64, scratch_operands = 1 : i64, tpu.core_type = #tpu.core_type<tc>, window_params = [{transform_indices = @transform_0, window_bounds = array<i64: 3, 24, 128>}, {pipeline_mode = #tpu.pipeline_mode<synchronous>, transform_indices = @transform_1, window_bounds = array<i64: 500, 216>}, {pipeline_mode = #tpu.pipeline_mode<synchronous>, transform_indices = @transform_2, window_bounds = array<i64: 500, 1>}, {pipeline_mode = #tpu.pipeline_mode<synchronous>, transform_indices = @transform_3, window_bounds = array<i64: 10, 500>}, {pipeline_mode = #tpu.pipeline_mode<synchronous>, transform_indices = @transform_4, window_bounds = array<i64: 10, 1>}, {transform_indices = @transform_5, window_bounds = array<i64: 10, 128>}]} {
    %c0 = arith.constant 0 : index
    %c0_0 = arith.constant 0 : index
    %c0_1 = arith.constant 0 : index
    %0 = vector.load %arg1[%c0, %c0_0, %c0_1] : memref<3x24x128xf32, #tpu.memory_space<vmem>>, vector<1x24x128xf32>
    %1 = vector.shape_cast %0 : vector<1x24x128xf32> to vector<24x128xf32>
    %c1 = arith.constant 1 : index
    %c0_2 = arith.constant 0 : index
    %c0_3 = arith.constant 0 : index
    %2 = vector.load %arg1[%c1, %c0_2, %c0_3] : memref<3x24x128xf32, #tpu.memory_space<vmem>>, vector<1x24x128xf32>
    %3 = vector.shape_cast %2 : vector<1x24x128xf32> to vector<24x128xf32>
    %c2 = arith.constant 2 : index
    %c0_4 = arith.constant 0 : index
    %c0_5 = arith.constant 0 : index
    %4 = vector.load %arg1[%c2, %c0_4, %c0_5] : memref<3x24x128xf32, #tpu.memory_space<vmem>>, vector<1x24x128xf32>
    %5 = vector.shape_cast %4 : vector<1x24x128xf32> to vector<24x128xf32>
    %cst = arith.constant 9.99999993E-9 : f32
    %6 = vector.broadcast %cst : f32 to vector<24x128xf32>
    %7 = arith.addf %1, %6 : vector<24x128xf32>
    %cst_6 = arith.constant 9.99999993E-9 : f32
    %8 = vector.broadcast %cst_6 : f32 to vector<24x128xf32>
    %9 = arith.addf %3, %8 : vector<24x128xf32>
    %cst_7 = arith.constant 9.99999993E-9 : f32
    %10 = vector.broadcast %cst_7 : f32 to vector<24x128xf32>
    %11 = arith.addf %5, %10 : vector<24x128xf32>
    %12 = arith.mulf %7, %7 : vector<24x128xf32>
    %13 = arith.mulf %9, %9 : vector<24x128xf32>
    %14 = arith.addf %12, %13 : vector<24x128xf32>
    %15 = arith.mulf %11, %11 : vector<24x128xf32>
    %16 = arith.addf %14, %15 : vector<24x128xf32>
    %17 = math.rsqrt %16 : vector<24x128xf32>
    %18 = arith.mulf %16, %17 : vector<24x128xf32>
    %19 = arith.mulf %1, %17 : vector<24x128xf32>
    %20 = arith.mulf %3, %17 : vector<24x128xf32>
    %21 = arith.mulf %5, %17 : vector<24x128xf32>
    %22 = math.sin %18 : vector<24x128xf32>
    %23 = math.cos %18 : vector<24x128xf32>
    %cst_8 = arith.constant 1.000000e+00 : f32
    %24 = vector.broadcast %cst_8 : f32 to vector<24x128xf32>
    %25 = arith.subf %24, %23 : vector<24x128xf32>
    %26 = arith.mulf %20, %20 : vector<24x128xf32>
    %27 = arith.mulf %21, %21 : vector<24x128xf32>
    %28 = arith.addf %26, %27 : vector<24x128xf32>
    %cst_9 = arith.constant 0.000000e+00 : f32
    %29 = vector.broadcast %cst_9 : f32 to vector<24x128xf32>
    %30 = arith.subf %29, %28 : vector<24x128xf32>
    %31 = arith.mulf %25, %30 : vector<24x128xf32>
    %c0_10 = arith.constant 0 : index
    %c0_11 = arith.constant 0 : index
    %32 = vector.load %arg7[%c0_10, %c0_11] : memref<216x128xf32, #tpu.memory_space<vmem>>, vector<24x128xf32>
    tpu.vector_store %arg7[%c0_10, %c0_11], %31 {strides = array<i32>} : memref<216x128xf32, #tpu.memory_space<vmem>>, vector<24x128xf32>,
    %33 = arith.mulf %19, %20 : vector<24x128xf32>
    %34 = arith.mulf %25, %33 : vector<24x128xf32>
    %35 = arith.mulf %22, %21 : vector<24x128xf32>
    %36 = arith.subf %34, %35 : vector<24x128xf32>
    %c24 = arith.constant 24 : index
    %c0_12 = arith.constant 0 : index
    %37 = vector.load %arg7[%c24, %c0_12] : memref<216x128xf32, #tpu.memory_space<vmem>>, vector<24x128xf32>
    tpu.vector_store %arg7[%c24, %c0_12], %36 {strides = array<i32>} : memref<216x128xf32, #tpu.memory_space<vmem>>, vector<24x128xf32>,
    %38 = arith.mulf %19, %21 : vector<24x128xf32>
    %39 = arith.mulf %25, %38 : vector<24x128xf32>
    %40 = arith.mulf %22, %20 : vector<24x128xf32>
    %41 = arith.addf %39, %40 : vector<24x128xf32>
    %c48 = arith.constant 48 : index
    %c0_13 = arith.constant 0 : index
    %42 = vector.load %arg7[%c48, %c0_13] : memref<216x128xf32, #tpu.memory_space<vmem>>, vector<24x128xf32>
    tpu.vector_store %arg7[%c48, %c0_13], %41 {strides = array<i32>} : memref<216x128xf32, #tpu.memory_space<vmem>>, vector<24x128xf32>,
    %43 = arith.mulf %19, %20 : vector<24x128xf32>
    %44 = arith.mulf %25, %43 : vector<24x128xf32>
    %45 = arith.mulf %22, %21 : vector<24x128xf32>
    %46 = arith.addf %44, %45 : vector<24x128xf32>
    %c72 = arith.constant 72 : index
    %c0_14 = arith.constant 0 : index
    %47 = vector.load %arg7[%c72, %c0_14] : memref<216x128xf32, #tpu.memory_space<vmem>>, vector<24x128xf32>
    tpu.vector_store %arg7[%c72, %c0_14], %46 {strides = array<i32>} : memref<216x128xf32, #tpu.memory_space<vmem>>, vector<24x128xf32>,
    %48 = arith.mulf %19, %19 : vector<24x128xf32>
    %49 = arith.mulf %21, %21 : vector<24x128xf32>
    %50 = arith.addf %48, %49 : vector<24x128xf32>
    %cst_15 = arith.constant 0.000000e+00 : f32
    %51 = vector.broadcast %cst_15 : f32 to vector<24x128xf32>
    %52 = arith.subf %51, %50 : vector<24x128xf32>
    %53 = arith.mulf %25, %52 : vector<24x128xf32>
    %c96 = arith.constant 96 : index
    %c0_16 = arith.constant 0 : index
    %54 = vector.load %arg7[%c96, %c0_16] : memref<216x128xf32, #tpu.memory_space<vmem>>, vector<24x128xf32>
    tpu.vector_store %arg7[%c96, %c0_16], %53 {strides = array<i32>} : memref<216x128xf32, #tpu.memory_space<vmem>>, vector<24x128xf32>,
    %55 = arith.mulf %20, %21 : vector<24x128xf32>
    %56 = arith.mulf %25, %55 : vector<24x128xf32>
    %57 = arith.mulf %22, %19 : vector<24x128xf32>
    %58 = arith.subf %56, %57 : vector<24x128xf32>
    %c120 = arith.constant 120 : index
    %c0_17 = arith.constant 0 : index
    %59 = vector.load %arg7[%c120, %c0_17] : memref<216x128xf32, #tpu.memory_space<vmem>>, vector<24x128xf32>
    tpu.vector_store %arg7[%c120, %c0_17], %58 {strides = array<i32>} : memref<216x128xf32, #tpu.memory_space<vmem>>, vector<24x128xf32>,
    %60 = arith.mulf %19, %21 : vector<24x128xf32>
    %61 = arith.mulf %25, %60 : vector<24x128xf32>
    %62 = arith.mulf %22, %20 : vector<24x128xf32>
    %63 = arith.subf %61, %62 : vector<24x128xf32>
    %c144 = arith.constant 144 : index
    %c0_18 = arith.constant 0 : index
    %64 = vector.load %arg7[%c144, %c0_18] : memref<216x128xf32, #tpu.memory_space<vmem>>, vector<24x128xf32>
    tpu.vector_store %arg7[%c144, %c0_18], %63 {strides = array<i32>} : memref<216x128xf32, #tpu.memory_space<vmem>>, vector<24x128xf32>,
    %65 = arith.mulf %20, %21 : vector<24x128xf32>
    %66 = arith.mulf %25, %65 : vector<24x128xf32>
    %67 = arith.mulf %22, %19 : vector<24x128xf32>
    %68 = arith.addf %66, %67 : vector<24x128xf32>
    %c168 = arith.constant 168 : index
    %c0_19 = arith.constant 0 : index
    %69 = vector.load %arg7[%c168, %c0_19] : memref<216x128xf32, #tpu.memory_space<vmem>>, vector<24x128xf32>
    tpu.vector_store %arg7[%c168, %c0_19], %68 {strides = array<i32>} : memref<216x128xf32, #tpu.memory_space<vmem>>, vector<24x128xf32>,
    %70 = arith.mulf %19, %19 : vector<24x128xf32>
    %71 = arith.mulf %20, %20 : vector<24x128xf32>
    %72 = arith.addf %70, %71 : vector<24x128xf32>
    %cst_20 = arith.constant 0.000000e+00 : f32
    %73 = vector.broadcast %cst_20 : f32 to vector<24x128xf32>
    %74 = arith.subf %73, %72 : vector<24x128xf32>
    %75 = arith.mulf %25, %74 : vector<24x128xf32>
    %c192 = arith.constant 192 : index
    %c0_21 = arith.constant 0 : index
    %76 = vector.load %arg7[%c192, %c0_21] : memref<216x128xf32, #tpu.memory_space<vmem>>, vector<24x128xf32>
    tpu.vector_store %arg7[%c192, %c0_21], %75 {strides = array<i32>} : memref<216x128xf32, #tpu.memory_space<vmem>>, vector<24x128xf32>,
    %c0_22 = arith.constant 0 : index
    %c0_23 = arith.constant 0 : index
    %77 = vector.load %arg2[%c0_22, %c0_23] : memref<500x216xf32, #tpu.memory_space<vmem>>, vector<500x216xf32>
    %c0_24 = arith.constant 0 : index
    %c0_25 = arith.constant 0 : index
    %78 = vector.load %arg7[%c0_24, %c0_25] : memref<216x128xf32, #tpu.memory_space<vmem>>, vector<216x128xf32>
    %cst_26 = arith.constant dense<0.000000e+00> : vector<500x128xf32>
    %79 = tpu.matmul %77, %78, %cst_26 {dimension_numbers = #tpu.dot_dimension_numbers<[1], [0], [0], [1], [0, 0, 1, 1], [], []>} : vector<500x216xf32>, vector<216x128xf32>, vector<500x128xf32> -> vector<500x128xf32>
    %c0_27 = arith.constant 0 : index
    %c0_28 = arith.constant 0 : index
    %80 = vector.load %arg3[%c0_27, %c0_28] : memref<500x1xf32, #tpu.memory_space<vmem>>, vector<500x1xf32>
    %81 = vector.broadcast %80 : vector<500x1xf32> to vector<500x128xf32>
    %82 = arith.addf %79, %81 : vector<500x128xf32>
    %cst_29 = arith.constant 0.000000e+00 : f32
    %83 = vector.broadcast %cst_29 : f32 to vector<500x128xf32>
    %84 = arith.maximumf %82, %83 : vector<500x128xf32>
    %c0_30 = arith.constant 0 : index
    %c0_31 = arith.constant 0 : index
    %85 = vector.load %arg4[%c0_30, %c0_31] : memref<10x500xf32, #tpu.memory_space<vmem>>, vector<10x500xf32>
    %cst_32 = arith.constant dense<0.000000e+00> : vector<10x128xf32>
    %86 = tpu.matmul %85, %84, %cst_32 {dimension_numbers = #tpu.dot_dimension_numbers<[1], [0], [0], [1], [0, 0, 1, 1], [], []>} : vector<10x500xf32>, vector<500x128xf32>, vector<10x128xf32> -> vector<10x128xf32>
    %c0_33 = arith.constant 0 : index
    %c0_34 = arith.constant 0 : index
    %87 = vector.load %arg5[%c0_33, %c0_34] : memref<10x1xf32, #tpu.memory_space<vmem>>, vector<10x1xf32>
    %88 = vector.broadcast %87 : vector<10x1xf32> to vector<10x128xf32>
    %89 = arith.addf %86, %88 : vector<10x128xf32>
    %c0_35 = arith.constant 0 : index
    %c0_36 = arith.constant 0 : index
    %90 = vector.load %arg6[%c0_35, %c0_36] : memref<10x128xf32, #tpu.memory_space<vmem>>, vector<10x128xf32>
    tpu.vector_store %arg6[%c0_35, %c0_36], %89 {strides = array<i32>} : memref<10x128xf32, #tpu.memory_space<vmem>>, vector<10x128xf32>,
    return
  }
  func.func @transform_0(%arg0: i32) -> (i32, i32, i32) {
    %c0_i32 = arith.constant 0 : i32
    %c0_i32_0 = arith.constant 0 : i32
    %c0_i32_1 = arith.constant 0 : i32
    return %c0_i32, %c0_i32_0, %arg0 : i32, i32, i32
  }
  func.func @transform_1(%arg0: i32) -> (i32, i32) {
    %c0_i32 = arith.constant 0 : i32
    %c0_i32_0 = arith.constant 0 : i32
    %c0_i32_1 = arith.constant 0 : i32
    return %c0_i32, %c0_i32_0 : i32, i32
  }
  func.func @transform_2(%arg0: i32) -> (i32, i32) {
    %c0_i32 = arith.constant 0 : i32
    %c0_i32_0 = arith.constant 0 : i32
    %c0_i32_1 = arith.constant 0 : i32
    return %c0_i32, %c0_i32_0 : i32, i32
  }
  func.func @transform_3(%arg0: i32) -> (i32, i32) {
    %c0_i32 = arith.constant 0 : i32
    %c0_i32_0 = arith.constant 0 : i32
    %c0_i32_1 = arith.constant 0 : i32
    return %c0_i32, %c0_i32_0 : i32, i32
  }
  func.func @transform_4(%arg0: i32) -> (i32, i32) {
    %c0_i32 = arith.constant 0 : i32
    %c0_i32_0 = arith.constant 0 : i32
    %c0_i32_1 = arith.constant 0 : i32
    return %c0_i32, %c0_i32_0 : i32, i32
  }
  func.func @transform_5(%arg0: i32) -> (i32, i32) {
    %c0_i32 = arith.constant 0 : i32
    %c0_i32_0 = arith.constant 0 : i32
    return %c0_i32, %arg0 : i32, i32
  }
}

</mosaic_0001>

<llo_original>
// kernel: pose_encoder_10d.1
$region0: #{pose_encoder_10d.1}
  #allocation0 [shape = 'u32[]', space=smem, size = 0x4, offset = 0x4, fixed_abs, tag = 'smem constant byte address 0x4 - core index']
  #allocation1 [shape = 'u32[72,128]{1,0:T(1,128)}', space=vmem, size = 0x9000, scoped, tag = 'internal scratch']
  #allocation2 [shape = 'f32[216,128]{1,0:T(8,128)}', space=vmem, size = 0x1b000, scoped, tag = 'scratch operand']
  %s0 = inlined_call_operand.vmem [shape: f32[3,24,128], index: 0, kind: input, shape index: {}]
  %s1 = inlined_call_operand.vmem [shape: f32[500,216], index: 1, kind: input, shape index: {}]
  %s2 = inlined_call_operand.vmem [shape: f32[500,1], index: 2, kind: input, shape index: {}]
  %s3 = inlined_call_operand.vmem [shape: f32[10,500], index: 3, kind: input, shape index: {}]
  %s4 = inlined_call_operand.vmem [shape: f32[10,1], index: 4, kind: input, shape index: {}]
  %s5 = inlined_call_operand.vmem [shape: f32[10,128], index: 5, kind: output, shape index: {}]
  %s6 = sld [smem:[#allocation0]]
  $region30: #{pose_encoder_10d.1} parent=0
    _
  %s8 = ssub.s32 1, %s6
  %s9 = scalar_select 0, %s8, %s6
  // Predicated region
  $region2: #{pose_encoder_10d.1} parent=0 // pred_check
    _
  $region3: #{pose_encoder_10d.1} parent=0 // pred_check_branch
    %11 = sbr.rel (0) target = $region5
  $region4: #{pose_encoder_10d.1} parent=0 // pred_region
    _
  $region5: #{pose_encoder_10d.1} parent=0 // pred_fallthru
    _
  // Predicated region
  $region6: #{pose_encoder_10d.1} parent=0 // pred_check
    _
  $region7: #{pose_encoder_10d.1} parent=0 // pred_check_branch
    %13 = sbr.rel (0) target = $region9
  $region8: #{pose_encoder_10d.1} parent=0 // pred_region
    _
  $region9: #{pose_encoder_10d.1} parent=0 // pred_fallthru
    _
  // Predicated region
  $region10: #{pose_encoder_10d.1} parent=0 // pred_check
    _
  $region11: #{pose_encoder_10d.1} parent=0 // pred_check_branch
    %15 = sbr.rel (0) target = $region13
  $region12: #{pose_encoder_10d.1} parent=0 // pred_region
    _
  $region13: #{pose_encoder_10d.1} parent=0 // pred_fallthru
    _
  // Predicated region
  $region14: #{pose_encoder_10d.1} parent=0 // pred_check
    _
  $region15: #{pose_encoder_10d.1} parent=0 // pred_check_branch
    %17 = sbr.rel (0) target = $region17
  $region16: #{pose_encoder_10d.1} parent=0 // pred_region
    _
  $region17: #{pose_encoder_10d.1} parent=0 // pred_fallthru
    _
  // Predicated region
  $region18: #{pose_encoder_10d.1} parent=0 // pred_check
    _
  $region19: #{pose_encoder_10d.1} parent=0 // pred_check_branch
    %19 = sbr.rel (0) target = $region21
  $region20: #{pose_encoder_10d.1} parent=0 // pred_region
    _
  $region21: #{pose_encoder_10d.1} parent=0 // pred_fallthru
    _
  %v20 = vld [vmem:[%s0] sm:$0xff]
  %v21 = vld [vmem:[%s0 + $0x8] sm:$0xff]
  %v22 = vld [vmem:[%s0 + $0x10] sm:$0xff]
  %s23 = scalar_lea.vmem %s0, 24
  %v24 = vld [vmem:[%s23] sm:$0xff]
  %v25 = vld [vmem:[%s23 + $0x8] sm:$0xff]
  %v26 = vld [vmem:[%s23 + $0x10] sm:$0xff]
  %s27 = scalar_lea.vmem %s0, 48
  %v28 = vld [vmem:[%s27] sm:$0xff]
  %v29 = vld [vmem:[%s27 + $0x8] sm:$0xff]
  %v30 = vld [vmem:[%s27 + $0x10] sm:$0xff]
  %v31 = vadd.f32 %v20, 1e-08
  %v32 = vadd.f32 %v21, 1e-08
  %v33 = vadd.f32 %v22, 1e-08
  %v34 = vadd.f32 %v24, 1e-08
  %v35 = vadd.f32 %v25, 1e-08
  %v36 = vadd.f32 %v26, 1e-08
  %v37 = vadd.f32 %v28, 1e-08
  %v38 = vadd.f32 %v29, 1e-08
  %v39 = vadd.f32 %v30, 1e-08
  %v40 = vmul.f32 %v31, %v31
  %v41 = vmul.f32 %v32, %v32
  %v42 = vmul.f32 %v33, %v33
  %v43 = vmul.f32 %v34, %v34
  %v44 = vmul.f32 %v35, %v35
  %v45 = vmul.f32 %v36, %v36
  %v46 = vadd.f32 %v40, %v43
  %v47 = vadd.f32 %v41, %v44
  %v48 = vadd.f32 %v42, %v45
  %v49 = vmul.f32 %v37, %v37
  %v50 = vmul.f32 %v38, %v38
  %v51 = vmul.f32 %v39, %v39
  %v52 = vadd.f32 %v46, %v49
  %v53 = vadd.f32 %v47, %v50
  %v54 = vadd.f32 %v48, %v51
  %v55 = vrsqrt.pop %v52
  %v56 = vmul.f32 %v55, %v52
  %v57 = vmul.f32 %v56, %v55
  %v58 = vmul.f32 0.5, %v57
  %v59 = vsub.f32 1.5, %v58
  %v60 = vmul.f32 %v55, %v59
  %vm61 = vweird.f32 %v52
  %vm62 = vweird.f32 %v55
  %vm63 = vmor %vm61, %vm62
  %v64 = vsel %vm63, %v55, %v60
  %v65 = vrsqrt.pop %v53
  %v66 = vmul.f32 %v65, %v53
  %v67 = vmul.f32 %v66, %v65
  %v68 = vmul.f32 0.5, %v67
  %v69 = vsub.f32 1.5, %v68
  %v70 = vmul.f32 %v65, %v69
  %vm71 = vweird.f32 %v53
  %vm72 = vweird.f32 %v65
  %vm73 = vmor %vm71, %vm72
  %v74 = vsel %vm73, %v65, %v70
  %v75 = vrsqrt.pop %v54
  %v76 = vmul.f32 %v75, %v54
  %v77 = vmul.f32 %v76, %v75
  %v78 = vmul.f32 0.5, %v77
  %v79 = vsub.f32 1.5, %v78
  %v80 = vmul.f32 %v75, %v79
  %vm81 = vweird.f32 %v54
  %vm82 = vweird.f32 %v75
  %vm83 = vmor %vm81, %vm82
  %v84 = vsel %vm83, %v75, %v80
  %v85 = vmul.f32 %v52, %v64
  %v86 = vmul.f32 %v53, %v74
  %v87 = vmul.f32 %v54, %v84
  %v88 = vmul.f32 %v20, %v64
  %v89 = vmul.f32 %v21, %v74
  %v90 = vmul.f32 %v22, %v84
  %v91 = vmul.f32 %v24, %v64
  %v92 = vmul.f32 %v25, %v74
  %v93 = vmul.f32 %v26, %v84
  %v94 = vmul.f32 %v28, %v64
  %v95 = vmul.f32 %v29, %v74
  %v96 = vmul.f32 %v30, %v84
  %v97 = vand.u32 2147483647, %v85
  %vm98 = vcmp.le.f32.partialorder %v97, 0.7853982
  %vm99 = vcmp.lt.s32.totalorder %v85, 0
  %v100 = vand.u32 %v85, 2139095040
  %v101 = vshrl.u32 %v100, 23
  %v102 = vsub.s32 %v101, 127
  %v103 = vand.u32 2147483647, %v85
  %v104 = vand.u32 %v103, 8388607
  %v105 = vor.u32 %v104, 8388608
  %v106 = vsub.s32 0, %v105
  %v107 = vadd.s32 %v102, 1
  %vm108 = vcmp.gt.s32.totalorder %v107, 0
  %v109 = vsel %vm108, %v107, 0
  %v110 = vshrl.u32 %v109, 5
  %v111 = vand.u32 %v109, 31
  %v112 = vsub.s32 32, %v111
  %v113 = vshrl.u32 683565275, %v112
  %v114 = vshll.u32 683565275, %v111
  %v115 = vshrl.u32 2475754826, %v112
  %v116 = vor.u32 %v114, %v115
  %v117 = vshll.u32 2475754826, %v111
  %v118 = vshrl.u32 2131351028, %v112
  %v119 = vor.u32 %v117, %v118
  %v120 = vshll.u32 2131351028, %v111
  %v121 = vshrl.u32 2102212464, %v112
  %v122 = vor.u32 %v120, %v121
  %v123 = vshll.u32 2102212464, %v111
  %v124 = vshrl.u32 920167782, %v112
  %v125 = vor.u32 %v123, %v124
  %v126 = vshll.u32 920167782, %v111
  %v127 = vshrl.u32 1326507024, %v112
  %v128 = vor.u32 %v126, %v127
  %vm129 = vcmp.lt.s32.totalorder %v110, 1
  %vm130 = vcmp.lt.s32.totalorder %v110, 2
  %vm131 = vcmp.lt.s32.totalorder %v110, 3
  %vm132 = vcmp.lt.s32.totalorder %v110, 4
  %v133 = vsel %vm129, %v113, %v116
  %v134 = vsel %vm132, %v122, 2102212464
  %v135 = vsel %vm131, %v119, %v134
  %v136 = vsel %vm130, %v133, %v135
  %v137 = vsel %vm129, %v116, %v119
  %v138 = vsel %vm132, %v125, 920167782
  %v139 = vsel %vm131, %v122, %v138
  %v140 = vsel %vm130, %v137, %v139
  %v141 = vsel %vm129, %v119, %v122
  %v142 = vsel %vm132, %v128, 1326507024
  %v143 = vsel %vm131, %v125, %v142
  %v144 = vsel %vm130, %v141, %v143
  %v145 = vshll.u32 %v105, 8
  %v146 = vand.u32 %v145, 65535
  %v147 = vshrl.u32 %v145, 16
  %v148 = vand.u32 %v144, 65535
  %v149 = vshrl.u32 %v144, 16
  %v150 = vmul.u32 %v146, %v148
  %v151 = vmul.u32 %v146, %v149
  %v152 = vmul.u32 %v147, %v148
  %v153 = vmul.u32 %v147, %v149
  %v154 = vshll.u32 %v151, 16
  %v155 = vshrl.u32 %v151, 16
  %v156 = vshll.u32 %v152, 16
  %v157 = vshrl.u32 %v152, 16
  %vm158 = vc.u32 %v150, %v154
  %v159 = vsel %vm158, 1, 0
  %v160 = vadd.s32 %v150, %v154
  %v161 = vadd.s32 %v153, %v159
  %vm162 = vc.u32 %v160, %v156
  %v163 = vsel %vm162, 1, 0
  %v164 = vadd.s32 %v160, %v156
  %v165 = vadd.s32 %v161, %v163
  %v166 = vadd.s32 %v165, %v155
  %v167 = vadd.s32 %v166, %v157
  %v168 = vand.u32 %v145, 65535
  %v169 = vshrl.u32 %v145, 16
  %v170 = vand.u32 %v140, 65535
  %v171 = vshrl.u32 %v140, 16
  %v172 = vmul.u32 %v168, %v170
  %v173 = vmul.u32 %v168, %v171
  %v174 = vmul.u32 %v169, %v170
  %v175 = vmul.u32 %v169, %v171
  %v176 = vshll.u32 %v173, 16
  %v177 = vshrl.u32 %v173, 16
  %v178 = vshll.u32 %v174, 16
  %v179 = vshrl.u32 %v174, 16
  %vm180 = vc.u32 %v172, %v176
  %v181 = vsel %vm180, 1, 0
  %v182 = vadd.s32 %v172, %v176
  %v183 = vadd.s32 %v175, %v181
  %vm184 = vc.u32 %v182, %v178
  %v185 = vsel %vm184, 1, 0
  %v186 = vadd.s32 %v182, %v178
  %v187 = vadd.s32 %v183, %v185
  %v188 = vadd.s32 %v187, %v177
  %v189 = vadd.s32 %v188, %v179
  %v190 = vmul.u32 %v145, %v136
  %v191 = vadd.s32 %v167, %v186
  %vm192 = vc.u32 %v167, %v186
  %v193 = vadd.s32 %v189, 1
  %v194 = vsel %vm192, %v193, %v189
  %v195 = vadd.s32 %v190, %v194
  %v196 = vadd.s32 %v195, 536870912
  %v197 = vshrl.u32 %v196, 30
  %v198 = vshll.u32 %v197, 30
  %v199 = vsub.s32 %v195, %v198
  %vm200 = vcmp.lt.s32.totalorder %v199, 0
  %v201 = vsub.s32 0, %v199
  %v202 = vsel %vm200, %v201, %v199
  %v203 = vclz %v202
  %v204 = vsub.s32 %v203, 2
  %vm205 = vcmp.gt.s32.totalorder 0, %v204
  %v206 = vsel %vm205, 0, %v204
  %v207 = vsub.s32 32, %v206
  %v208 = vshll.u32 %v199, %v206
  %v209 = vshrl.u32 %v191, %v207
  %v210 = vor.u32 %v208, %v209
  %v211 = vsub.s32 4294967266, %v206
  %v212 = vadd.s32 %v211, 127
  %v213 = vshll.u32 %v212, 23
  %v214 = vor.u32 4788187, %v213
  %v215 = vand.u32 2147483647, %v214
  %v217 = vcvt.s32.f32 %v210
  %v218 = vmul.f32 %v217, %v215
  %v219 = vxor.u32 %v218, 2147483648
  %v220 = vsel %vm99, %v219, %v218
  %v221 = vsub.s32 4, %v197
  %v222 = vsel %vm99, %v221, %v197
  %v223 = vsel %vm98, %v85, %v220
  %v224 = vsel %vm98, 0, %v222
  %v225 = vmul.f32 %v223, %v223
  %v226 = vmul.f32 %v225, -0.001358992
  %v227 = vadd.f32 %v226, 0.041655596
  %v228 = vmul.f32 %v225, %v227
  %v229 = vadd.f32 %v228, -0.4999988
  %v230 = vmul.f32 %v225, %v229
  %v231 = vadd.f32 1.0, %v230
  %v232 = vmul.f32 %v223, %v223
  %v233 = vmul.f32 %v232, -0.00019511016
  %v234 = vadd.f32 %v233, 0.008332121
  %v235 = vmul.f32 %v232, %v234
  %v236 = vadd.f32 %v235, -0.16666654
  %v237 = vmul.f32 %v232, %v236
  %v238 = vadd.f32 %v237, 1.0
  %v239 = vmul.f32 %v238, %v223
  %vm240 = vweird.f32 %v85
  %v241 = vadd.s32 %v224, 3
  %v242 = vand.u32 %v241, 3
  %vm243 = vcmp.lt.s32.totalorder %v242, 2
  %vm244 = vcmp.eq.s32.totalorder %v242, 0
  %v245 = vxor.u32 %v239, 2147483648
  %v246 = vsel %vm244, %v231, %v245
  %vm247 = vcmp.eq.s32.totalorder %v242, 2
  %v248 = vxor.u32 %v231, 2147483648
  %v249 = vsel %vm247, %v248, %v239
  %v250 = vsel %vm243, %v246, %v249
  %v251 = vsel %vm240, nan, %v250
  %v252 = vand.u32 2147483647, %v86
  %vm253 = vcmp.le.f32.partialorder %v252, 0.7853982
  %vm254 = vcmp.lt.s32.totalorder %v86, 0
  %v255 = vand.u32 %v86, 2139095040
  %v256 = vshrl.u32 %v255, 23
  %v257 = vsub.s32 %v256, 127
  %v258 = vand.u32 2147483647, %v86
  %v259 = vand.u32 %v258, 8388607
  %v260 = vor.u32 %v259, 8388608
  %v261 = vsub.s32 0, %v260
  %v262 = vadd.s32 %v257, 1
  %vm263 = vcmp.gt.s32.totalorder %v262, 0
  %v264 = vsel %vm263, %v262, 0
  %v265 = vshrl.u32 %v264, 5
  %v266 = vand.u32 %v264, 31
  %v267 = vsub.s32 32, %v266
  %v268 = vshrl.u32 683565275, %v267
  %v269 = vshll.u32 683565275, %v266
  %v270 = vshrl.u32 2475754826, %v267
  %v271 = vor.u32 %v269, %v270
  %v272 = vshll.u32 2475754826, %v266
  %v273 = vshrl.u32 2131351028, %v267
  %v274 = vor.u32 %v272, %v273
  %v275 = vshll.u32 2131351028, %v266
  %v276 = vshrl.u32 2102212464, %v267
  %v277 = vor.u32 %v275, %v276
  %v278 = vshll.u32 2102212464, %v266
  %v279 = vshrl.u32 920167782, %v267
  %v280 = vor.u32 %v278, %v279
  %v281 = vshll.u32 920167782, %v266
  %v282 = vshrl.u32 1326507024, %v267
  %v283 = vor.u32 %v281, %v282
  %vm284 = vcmp.lt.s32.totalorder %v265, 1
  %vm285 = vcmp.lt.s32.totalorder %v265, 2
  %vm286 = vcmp.lt.s32.totalorder %v265, 3
  %vm287 = vcmp.lt.s32.totalorder %v265, 4
  %v288 = vsel %vm284, %v268, %v271
  %v289 = vsel %vm287, %v277, 2102212464
  %v290 = vsel %vm286, %v274, %v289
  %v291 = vsel %vm285, %v288, %v290
  %v292 = vsel %vm284, %v271, %v274
  %v293 = vsel %vm287, %v280, 920167782
  %v294 = vsel %vm286, %v277, %v293
  %v295 = vsel %vm285, %v292, %v294
  %v296 = vsel %vm284, %v274, %v277
  %v297 = vsel %vm287, %v283, 1326507024
  %v298 = vsel %vm286, %v280, %v297
  %v299 = vsel %vm285, %v296, %v298
  %v300 = vshll.u32 %v260, 8
  %v301 = vand.u32 %v300, 65535
  %v302 = vshrl.u32 %v300, 16
  %v303 = vand.u32 %v299, 65535
  %v304 = vshrl.u32 %v299, 16
  %v305 = vmul.u32 %v301, %v303
  %v306 = vmul.u32 %v301, %v304
  %v307 = vmul.u32 %v302, %v303
  %v308 = vmul.u32 %v302, %v304
  %v309 = vshll.u32 %v306, 16
  %v310 = vshrl.u32 %v306, 16
  %v311 = vshll.u32 %v307, 16
  %v312 = vshrl.u32 %v307, 16
  %vm313 = vc.u32 %v305, %v309
  %v314 = vsel %vm313, 1, 0
  %v315 = vadd.s32 %v305, %v309
  %v316 = vadd.s32 %v308, %v314
  %vm317 = vc.u32 %v315, %v311
  %v318 = vsel %vm317, 1, 0
  %v319 = vadd.s32 %v315, %v311
  %v320 = vadd.s32 %v316, %v318
  %v321 = vadd.s32 %v320, %v310
  %v322 = vadd.s32 %v321, %v312
  %v323 = vand.u32 %v300, 65535
  %v324 = vshrl.u32 %v300, 16
  %v325 = vand.u32 %v295, 65535
  %v326 = vshrl.u32 %v295, 16
  %v327 = vmul.u32 %v323, %v325
  %v328 = vmul.u32 %v323, %v326
  %v329 = vmul.u32 %v324, %v325
  %v330 = vmul.u32 %v324, %v326
  %v331 = vshll.u32 %v328, 16
  %v332 = vshrl.u32 %v328, 16
  %v333 = vshll.u32 %v329, 16
  %v334 = vshrl.u32 %v329, 16
  %vm335 = vc.u32 %v327, %v331
  %v336 = vsel %vm335, 1, 0
  %v337 = vadd.s32 %v327, %v331
  %v338 = vadd.s32 %v330, %v336
  %vm339 = vc.u32 %v337, %v333
  %v340 = vsel %vm339, 1, 0
  %v341 = vadd.s32 %v337, %v333
  %v342 = vadd.s32 %v338, %v340
  %v343 = vadd.s32 %v342, %v332
  %v344 = vadd.s32 %v343, %v334
  %v345 = vmul.u32 %v300, %v291
  %v346 = vadd.s32 %v322, %v341
  %vm347 = vc.u32 %v322, %v341
  %v348 = vadd.s32 %v344, 1
  %v349 = vsel %vm347, %v348, %v344
  %v350 = vadd.s32 %v345, %v349
  %v351 = vadd.s32 %v350, 536870912
  %v352 = vshrl.u32 %v351, 30
  %v353 = vshll.u32 %v352, 30
  %v354 = vsub.s32 %v350, %v353
  %vm355 = vcmp.lt.s32.totalorder %v354, 0
  %v356 = vsub.s32 0, %v354
  %v357 = vsel %vm355, %v356, %v354
  %v358 = vclz %v357
  %v359 = vsub.s32 %v358, 2
  %vm360 = vcmp.gt.s32.totalorder 0, %v359
  %v361 = vsel %vm360, 0, %v359
  %v362 = vsub.s32 32, %v361
  %v363 = vshll.u32 %v354, %v361
  %v364 = vshrl.u32 %v346, %v362
  %v365 = vor.u32 %v363, %v364
  %v366 = vsub.s32 4294967266, %v361
  %v367 = vadd.s32 %v366, 127
  %v368 = vshll.u32 %v367, 23
  %v369 = vor.u32 4788187, %v368
  %v370 = vand.u32 2147483647, %v369
  %v372 = vcvt.s32.f32 %v365
  %v373 = vmul.f32 %v372, %v370
  %v374 = vxor.u32 %v373, 2147483648
  %v375 = vsel %vm254, %v374, %v373
  %v376 = vsub.s32 4, %v352
  %v377 = vsel %vm254, %v376, %v352
  %v378 = vsel %vm253, %v86, %v375
  %v379 = vsel %vm253, 0, %v377
  %v380 = vmul.f32 %v378, %v378
  %v381 = vmul.f32 %v380, -0.001358992
  %v382 = vadd.f32 %v381, 0.041655596
  %v383 = vmul.f32 %v380, %v382
  %v384 = vadd.f32 %v383, -0.4999988
  %v385 = vmul.f32 %v380, %v384
  %v386 = vadd.f32 1.0, %v385
  %v387 = vmul.f32 %v378, %v378
  %v388 = vmul.f32 %v387, -0.00019511016
  %v389 = vadd.f32 %v388, 0.008332121
  %v390 = vmul.f32 %v387, %v389
  %v391 = vadd.f32 %v390, -0.16666654
  %v392 = vmul.f32 %v387, %v391
  %v393 = vadd.f32 %v392, 1.0
  %v394 = vmul.f32 %v393, %v378
  %vm395 = vweird.f32 %v86
  %v396 = vadd.s32 %v379, 3
  %v397 = vand.u32 %v396, 3
  %vm398 = vcmp.lt.s32.totalorder %v397, 2
  %vm399 = vcmp.eq.s32.totalorder %v397, 0
  %v400 = vxor.u32 %v394, 2147483648
  %v401 = vsel %vm399, %v386, %v400
  %vm402 = vcmp.eq.s32.totalorder %v397, 2
  %v403 = vxor.u32 %v386, 2147483648
  %v404 = vsel %vm402, %v403, %v394
  %v405 = vsel %vm398, %v401, %v404
  %v406 = vsel %vm395, nan, %v405
  %v407 = vand.u32 2147483647, %v87
  %vm408 = vcmp.le.f32.partialorder %v407, 0.7853982
  %vm409 = vcmp.lt.s32.totalorder %v87, 0
  %v410 = vand.u32 %v87, 2139095040
  %v411 = vshrl.u32 %v410, 23
  %v412 = vsub.s32 %v411, 127
  %v413 = vand.u32 2147483647, %v87
  %v414 = vand.u32 %v413, 8388607
  %v415 = vor.u32 %v414, 8388608
  %v416 = vsub.s32 0, %v415
  %v417 = vadd.s32 %v412, 1
  %vm418 = vcmp.gt.s32.totalorder %v417, 0
  %v419 = vsel %vm418, %v417, 0
  %v420 = vshrl.u32 %v419, 5
  %v421 = vand.u32 %v419, 31
  %v422 = vsub.s32 32, %v421
  %v423 = vshrl.u32 683565275, %v422
  %v424 = vshll.u32 683565275, %v421
  %v425 = vshrl.u32 2475754826, %v422
  %v426 = vor.u32 %v424, %v425
  %v427 = vshll.u32 2475754826, %v421
  %v428 = vshrl.u32 2131351028, %v422
  %v429 = vor.u32 %v427, %v428
  %v430 = vshll.u32 2131351028, %v421
  %v431 = vshrl.u32 2102212464, %v422
  %v432 = vor.u32 %v430, %v431
  %v433 = vshll.u32 2102212464, %v421
  %v434 = vshrl.u32 920167782, %v422
  %v435 = vor.u32 %v433, %v434
  %v436 = vshll.u32 920167782, %v421
  %v437 = vshrl.u32 1326507024, %v422
  %v438 = vor.u32 %v436, %v437
  %vm439 = vcmp.lt.s32.totalorder %v420, 1
  %vm440 = vcmp.lt.s32.totalorder %v420, 2
  %vm441 = vcmp.lt.s32.totalorder %v420, 3
  %vm442 = vcmp.lt.s32.totalorder %v420, 4
  %v443 = vsel %vm439, %v423, %v426
  %v444 = vsel %vm442, %v432, 2102212464
  %v445 = vsel %vm441, %v429, %v444
  %v446 = vsel %vm440, %v443, %v445
  %v447 = vsel %vm439, %v426, %v429
  %v448 = vsel %vm442, %v435, 920167782
  %v449 = vsel %vm441, %v432, %v448
  %v450 = vsel %vm440, %v447, %v449
  %v451 = vsel %vm439, %v429, %v432
  %v452 = vsel %vm442, %v438, 1326507024
  %v453 = vsel %vm441, %v435, %v452
  %v454 = vsel %vm440, %v451, %v453
  %v455 = vshll.u32 %v415, 8
  %v456 = vand.u32 %v455, 65535
  %v457 = vshrl.u32 %v455, 16
  %v458 = vand.u32 %v454, 65535
  %v459 = vshrl.u32 %v454, 16
  %v460 = vmul.u32 %v456, %v458
  %v461 = vmul.u32 %v456, %v459
  %v462 = vmul.u32 %v457, %v458
  %v463 = vmul.u32 %v457, %v459
  %v464 = vshll.u32 %v461, 16
  %v465 = vshrl.u32 %v461, 16
  %v466 = vshll.u32 %v462, 16
  %v467 = vshrl.u32 %v462, 16
  %vm468 = vc.u32 %v460, %v464
  %v469 = vsel %vm468, 1, 0
  %v470 = vadd.s32 %v460, %v464
  %v471 = vadd.s32 %v463, %v469
  %vm472 = vc.u32 %v470, %v466
  %v473 = vsel %vm472, 1, 0
  %v474 = vadd.s32 %v470, %v466
  %v475 = vadd.s32 %v471, %v473
  %v476 = vadd.s32 %v475, %v465
  %v477 = vadd.s32 %v476, %v467
  %v478 = vand.u32 %v455, 65535
  %v479 = vshrl.u32 %v455, 16
  %v480 = vand.u32 %v450, 65535
  %v481 = vshrl.u32 %v450, 16
  %v482 = vmul.u32 %v478, %v480
  %v483 = vmul.u32 %v478, %v481
  %v484 = vmul.u32 %v479, %v480
  %v485 = vmul.u32 %v479, %v481
  %v486 = vshll.u32 %v483, 16
  %v487 = vshrl.u32 %v483, 16
  %v488 = vshll.u32 %v484, 16
  %v489 = vshrl.u32 %v484, 16
  %vm490 = vc.u32 %v482, %v486
  %v491 = vsel %vm490, 1, 0
  %v492 = vadd.s32 %v482, %v486
  %v493 = vadd.s32 %v485, %v491
  %vm494 = vc.u32 %v492, %v488
  %v495 = vsel %vm494, 1, 0
  %v496 = vadd.s32 %v492, %v488
  %v497 = vadd.s32 %v493, %v495
  %v498 = vadd.s32 %v497, %v487
  %v499 = vadd.s32 %v498, %v489
  %v500 = vmul.u32 %v455, %v446
  %v501 = vadd.s32 %v477, %v496
  %vm502 = vc.u32 %v477, %v496
  %v503 = vadd.s32 %v499, 1
  %v504 = vsel %vm502, %v503, %v499
  %v505 = vadd.s32 %v500, %v504
  %v506 = vadd.s32 %v505, 536870912
  %v507 = vshrl.u32 %v506, 30
  %v508 = vshll.u32 %v507, 30
  %v509 = vsub.s32 %v505, %v508
  %vm510 = vcmp.lt.s32.totalorder %v509, 0
  %v511 = vsub.s32 0, %v509
  %v512 = vsel %vm510, %v511, %v509
  %v513 = vclz %v512
  %v514 = vsub.s32 %v513, 2
  %vm515 = vcmp.gt.s32.totalorder 0, %v514
  %v516 = vsel %vm515, 0, %v514
  %v517 = vsub.s32 32, %v516
  %v518 = vshll.u32 %v509, %v516
  %v519 = vshrl.u32 %v501, %v517
  %v520 = vor.u32 %v518, %v519
  %v521 = vsub.s32 4294967266, %v516
  %v522 = vadd.s32 %v521, 127
  %v523 = vshll.u32 %v522, 23
  %v524 = vor.u32 4788187, %v523
  %v525 = vand.u32 2147483647, %v524
  %v527 = vcvt.s32.f32 %v520
  %v528 = vmul.f32 %v527, %v525
  %v529 = vxor.u32 %v528, 2147483648
  %v530 = vsel %vm409, %v529, %v528
  %v531 = vsub.s32 4, %v507
  %v532 = vsel %vm409, %v531, %v507
  %v533 = vsel %vm408, %v87, %v530
  %v534 = vsel %vm408, 0, %v532
  %v535 = vmul.f32 %v533, %v533
  %v536 = vmul.f32 %v535, -0.001358992
  %v537 = vadd.f32 %v536, 0.041655596
  %v538 = vmul.f32 %v535, %v537
  %v539 = vadd.f32 %v538, -0.4999988
  %v540 = vmul.f32 %v535, %v539
  %v541 = vadd.f32 1.0, %v540
  %v542 = vmul.f32 %v533, %v533
  %v543 = vmul.f32 %v542, -0.00019511016
  %v544 = vadd.f32 %v543, 0.008332121
  %v545 = vmul.f32 %v542, %v544
  %v546 = vadd.f32 %v545, -0.16666654
  %v547 = vmul.f32 %v542, %v546
  %v548 = vadd.f32 %v547, 1.0
  %v549 = vmul.f32 %v548, %v533
  %vm550 = vweird.f32 %v87
  %v551 = vadd.s32 %v534, 3
  %v552 = vand.u32 %v551, 3
  %vm553 = vcmp.lt.s32.totalorder %v552, 2
  %vm554 = vcmp.eq.s32.totalorder %v552, 0
  %v555 = vxor.u32 %v549, 2147483648
  %v556 = vsel %vm554, %v541, %v555
  %vm557 = vcmp.eq.s32.totalorder %v552, 2
  %v558 = vxor.u32 %v541, 2147483648
  %v559 = vsel %vm557, %v558, %v549
  %v560 = vsel %vm553, %v556, %v559
  %v561 = vsel %vm550, nan, %v560
  %v562 = vand.u32 2147483647, %v85
  %vm563 = vcmp.le.f32.partialorder %v562, 0.7853982
  %vm564 = vcmp.lt.s32.totalorder %v85, 0
  %v565 = vand.u32 %v85, 2139095040
  %v566 = vshrl.u32 %v565, 23
  %v567 = vsub.s32 %v566, 127
  %v568 = vand.u32 2147483647, %v85
  %v569 = vand.u32 %v568, 8388607
  %v570 = vor.u32 %v569, 8388608
  %v571 = vsub.s32 0, %v570
  %v572 = vadd.s32 %v567, 1
  %vm573 = vcmp.gt.s32.totalorder %v572, 0
  %v574 = vsel %vm573, %v572, 0
  %v575 = vshrl.u32 %v574, 5
  %v576 = vand.u32 %v574, 31
  %v577 = vsub.s32 32, %v576
  %v578 = vshrl.u32 683565275, %v577
  %v579 = vshll.u32 683565275, %v576
  %v580 = vshrl.u32 2475754826, %v577
  %v581 = vor.u32 %v579, %v580
  %v582 = vshll.u32 2475754826, %v576
  %v583 = vshrl.u32 2131351028, %v577
  %v584 = vor.u32 %v582, %v583
  %v585 = vshll.u32 2131351028, %v576
  %v586 = vshrl.u32 2102212464, %v577
  %v587 = vor.u32 %v585, %v586
  %v588 = vshll.u32 2102212464, %v576
  %v589 = vshrl.u32 920167782, %v577
  %v590 = vor.u32 %v588, %v589
  %v591 = vshll.u32 920167782, %v576
  %v592 = vshrl.u32 1326507024, %v577
  %v593 = vor.u32 %v591, %v592
  %vm594 = vcmp.lt.s32.totalorder %v575, 1
  %vm595 = vcmp.lt.s32.totalorder %v575, 2
  %vm596 = vcmp.lt.s32.totalorder %v575, 3
  %vm597 = vcmp.lt.s32.totalorder %v575, 4
  %v598 = vsel %vm594, %v578, %v581
  %v599 = vsel %vm597, %v587, 2102212464
  %v600 = vsel %vm596, %v584, %v599
  %v601 = vsel %vm595, %v598, %v600
  %v602 = vsel %vm594, %v581, %v584
  %v603 = vsel %vm597, %v590, 920167782
  %v604 = vsel %vm596, %v587, %v603
  %v605 = vsel %vm595, %v602, %v604
  %v606 = vsel %vm594, %v584, %v587
  %v607 = vsel %vm597, %v593, 1326507024
  %v608 = vsel %vm596, %v590, %v607
  %v609 = vsel %vm595, %v606, %v608
  %v610 = vshll.u32 %v570, 8
  %v611 = vand.u32 %v610, 65535
  %v612 = vshrl.u32 %v610, 16
  %v613 = vand.u32 %v609, 65535
  %v614 = vshrl.u32 %v609, 16
  %v615 = vmul.u32 %v611, %v613
  %v616 = vmul.u32 %v611, %v614
  %v617 = vmul.u32 %v612, %v613
  %v618 = vmul.u32 %v612, %v614
  %v619 = vshll.u32 %v616, 16
  %v620 = vshrl.u32 %v616, 16
  %v621 = vshll.u32 %v617, 16
  %v622 = vshrl.u32 %v617, 16
  %vm623 = vc.u32 %v615, %v619
  %v624 = vsel %vm623, 1, 0
  %v625 = vadd.s32 %v615, %v619
  %v626 = vadd.s32 %v618, %v624
  %vm627 = vc.u32 %v625, %v621
  %v628 = vsel %vm627, 1, 0
  %v629 = vadd.s32 %v625, %v621
  %v630 = vadd.s32 %v626, %v628
  %v631 = vadd.s32 %v630, %v620
  %v632 = vadd.s32 %v631, %v622
  %v633 = vand.u32 %v610, 65535
  %v634 = vshrl.u32 %v610, 16
  %v635 = vand.u32 %v605, 65535
  %v636 = vshrl.u32 %v605, 16
  %v637 = vmul.u32 %v633, %v635
  %v638 = vmul.u32 %v633, %v636
  %v639 = vmul.u32 %v634, %v635
  %v640 = vmul.u32 %v634, %v636
  %v641 = vshll.u32 %v638, 16
  %v642 = vshrl.u32 %v638, 16
  %v643 = vshll.u32 %v639, 16
  %v644 = vshrl.u32 %v639, 16
  %vm645 = vc.u32 %v637, %v641
  %v646 = vsel %vm645, 1, 0
  %v647 = vadd.s32 %v637, %v641
  %v648 = vadd.s32 %v640, %v646
  %vm649 = vc.u32 %v647, %v643
  %v650 = vsel %vm649, 1, 0
  %v651 = vadd.s32 %v647, %v643
  %v652 = vadd.s32 %v648, %v650
  %v653 = vadd.s32 %v652, %v642
  %v654 = vadd.s32 %v653, %v644
  %v655 = vmul.u32 %v610, %v601
  %v656 = vadd.s32 %v632, %v651
  %vm657 = vc.u32 %v632, %v651
  %v658 = vadd.s32 %v654, 1
  %v659 = vsel %vm657, %v658, %v654
  %v660 = vadd.s32 %v655, %v659
  %v661 = vadd.s32 %v660, 536870912
  %v662 = vshrl.u32 %v661, 30
  %v663 = vshll.u32 %v662, 30
  %v664 = vsub.s32 %v660, %v663
  %vm665 = vcmp.lt.s32.totalorder %v664, 0
  %v666 = vsub.s32 0, %v664
  %v667 = vsel %vm665, %v666, %v664
  %v668 = vclz %v667
  %v669 = vsub.s32 %v668, 2
  %vm670 = vcmp.gt.s32.totalorder 0, %v669
  %v671 = vsel %vm670, 0, %v669
  %v672 = vsub.s32 32, %v671
  %v673 = vshll.u32 %v664, %v671
  %v674 = vshrl.u32 %v656, %v672
  %v675 = vor.u32 %v673, %v674
  %v676 = vsub.s32 4294967266, %v671
  %v677 = vadd.s32 %v676, 127
  %v678 = vshll.u32 %v677, 23
  %v679 = vor.u32 4788187, %v678
  %v680 = vand.u32 2147483647, %v679
  %v682 = vcvt.s32.f32 %v675
  %v683 = vmul.f32 %v682, %v680
  %v684 = vxor.u32 %v683, 2147483648
  %v685 = vsel %vm564, %v684, %v683
  %v686 = vsub.s32 4, %v662
  %v687 = vsel %vm564, %v686, %v662
  %v688 = vsel %vm563, %v85, %v685
  %v689 = vsel %vm563, 0, %v687
  %v690 = vmul.f32 %v688, %v688
  %v691 = vmul.f32 %v690, -0.001358992
  %v692 = vadd.f32 %v691, 0.041655596
  %v693 = vmul.f32 %v690, %v692
  %v694 = vadd.f32 %v693, -0.4999988
  %v695 = vmul.f32 %v690, %v694
  %v696 = vadd.f32 1.0, %v695
  %v697 = vmul.f32 %v688, %v688
  %v698 = vmul.f32 %v697, -0.00019511016
  %v699 = vadd.f32 %v698, 0.008332121
  %v700 = vmul.f32 %v697, %v699
  %v701 = vadd.f32 %v700, -0.16666654
  %v702 = vmul.f32 %v697, %v701
  %v703 = vadd.f32 %v702, 1.0
  %v704 = vmul.f32 %v703, %v688
  %vm705 = vweird.f32 %v85
  %v706 = vand.u32 %v689, 3
  %vm707 = vcmp.lt.s32.totalorder %v706, 2
  %vm708 = vcmp.eq.s32.totalorder %v706, 0
  %v709 = vxor.u32 %v704, 2147483648
  %v710 = vsel %vm708, %v696, %v709
  %vm711 = vcmp.eq.s32.totalorder %v706, 2
  %v712 = vxor.u32 %v696, 2147483648
  %v713 = vsel %vm711, %v712, %v704
  %v714 = vsel %vm707, %v710, %v713
  %v715 = vsel %vm705, nan, %v714
  %v716 = vand.u32 2147483647, %v86
  %vm717 = vcmp.le.f32.partialorder %v716, 0.7853982
  %vm718 = vcmp.lt.s32.totalorder %v86, 0
  %v719 = vand.u32 %v86, 2139095040
  %v720 = vshrl.u32 %v719, 23
  %v721 = vsub.s32 %v720, 127
  %v722 = vand.u32 2147483647, %v86
  %v723 = vand.u32 %v722, 8388607
  %v724 = vor.u32 %v723, 8388608
  %v725 = vsub.s32 0, %v724
  %v726 = vadd.s32 %v721, 1
  %vm727 = vcmp.gt.s32.totalorder %v726, 0
  %v728 = vsel %vm727, %v726, 0
  %v729 = vshrl.u32 %v728, 5
  %v730 = vand.u32 %v728, 31
  %v731 = vsub.s32 32, %v730
  %v732 = vshrl.u32 683565275, %v731
  %v733 = vshll.u32 683565275, %v730
  %v734 = vshrl.u32 2475754826, %v731
  %v735 = vor.u32 %v733, %v734
  %v736 = vshll.u32 2475754826, %v730
  %v737 = vshrl.u32 2131351028, %v731
  %v738 = vor.u32 %v736, %v737
  %v739 = vshll.u32 2131351028, %v730
  %v740 = vshrl.u32 2102212464, %v731
  %v741 = vor.u32 %v739, %v740
  %v742 = vshll.u32 2102212464, %v730
  %v743 = vshrl.u32 920167782, %v731
  %v744 = vor.u32 %v742, %v743
  %v745 = vshll.u32 920167782, %v730
  %v746 = vshrl.u32 1326507024, %v731
  %v747 = vor.u32 %v745, %v746
  %vm748 = vcmp.lt.s32.totalorder %v729, 1
  %vm749 = vcmp.lt.s32.totalorder %v729, 2
  %vm750 = vcmp.lt.s32.totalorder %v729, 3
  %vm751 = vcmp.lt.s32.totalorder %v729, 4
  %v752 = vsel %vm748, %v732, %v735
  %v753 = vsel %vm751, %v741, 2102212464
  %v754 = vsel %vm750, %v738, %v753
  %v755 = vsel %vm749, %v752, %v754
  %v756 = vsel %vm748, %v735, %v738
  %v757 = vsel %vm751, %v744, 920167782
  %v758 = vsel %vm750, %v741, %v757
  %v759 = vsel %vm749, %v756, %v758
  %v760 = vsel %vm748, %v738, %v741
  %v761 = vsel %vm751, %v747, 1326507024
  %v762 = vsel %vm750, %v744, %v761
  %v763 = vsel %vm749, %v760, %v762
  %v764 = vshll.u32 %v724, 8
  %v765 = vand.u32 %v764, 65535
  %v766 = vshrl.u32 %v764, 16
  %v767 = vand.u32 %v763, 65535
  %v768 = vshrl.u32 %v763, 16
  %v769 = vmul.u32 %v765, %v767
  %v770 = vmul.u32 %v765, %v768
  %v771 = vmul.u32 %v766, %v767
  %v772 = vmul.u32 %v766, %v768
  %v773 = vshll.u32 %v770, 16
  %v774 = vshrl.u32 %v770, 16
  %v775 = vshll.u32 %v771, 16
  %v776 = vshrl.u32 %v771, 16
  %vm777 = vc.u32 %v769, %v773
  %v778 = vsel %vm777, 1, 0
  %v779 = vadd.s32 %v769, %v773
  %v780 = vadd.s32 %v772, %v778
  %vm781 = vc.u32 %v779, %v775
  %v782 = vsel %vm781, 1, 0
  %v783 = vadd.s32 %v779, %v775
  %v784 = vadd.s32 %v780, %v782
  %v785 = vadd.s32 %v784, %v774
  %v786 = vadd.s32 %v785, %v776
  %v787 = vand.u32 %v764, 65535
  %v788 = vshrl.u32 %v764, 16
  %v789 = vand.u32 %v759, 65535
  %v790 = vshrl.u32 %v759, 16
  %v791 = vmul.u32 %v787, %v789
  %v792 = vmul.u32 %v787, %v790
  %v793 = vmul.u32 %v788, %v789
  %v794 = vmul.u32 %v788, %v790
  %v795 = vshll.u32 %v792, 16
  %v796 = vshrl.u32 %v792, 16
  %v797 = vshll.u32 %v793, 16
  %v798 = vshrl.u32 %v793, 16
  %vm799 = vc.u32 %v791, %v795
  %v800 = vsel %vm799, 1, 0
  %v801 = vadd.s32 %v791, %v795
  %v802 = vadd.s32 %v794, %v800
  %vm803 = vc.u32 %v801, %v797
  %v804 = vsel %vm803, 1, 0
  %v805 = vadd.s32 %v801, %v797
  %v806 = vadd.s32 %v802, %v804
  %v807 = vadd.s32 %v806, %v796
  %v808 = vadd.s32 %v807, %v798
  %v809 = vmul.u32 %v764, %v755
  %v810 = vadd.s32 %v786, %v805
  %vm811 = vc.u32 %v786, %v805
  %v812 = vadd.s32 %v808, 1
  %v813 = vsel %vm811, %v812, %v808
  %v814 = vadd.s32 %v809, %v813
  %v815 = vadd.s32 %v814, 536870912
  %v816 = vshrl.u32 %v815, 30
  %v817 = vshll.u32 %v816, 30
  %v818 = vsub.s32 %v814, %v817
  %vm819 = vcmp.lt.s32.totalorder %v818, 0
  %v820 = vsub.s32 0, %v818
  %v821 = vsel %vm819, %v820, %v818
  %v822 = vclz %v821
  %v823 = vsub.s32 %v822, 2
  %vm824 = vcmp.gt.s32.totalorder 0, %v823
  %v825 = vsel %vm824, 0, %v823
  %v826 = vsub.s32 32, %v825
  %v827 = vshll.u32 %v818, %v825
  %v828 = vshrl.u32 %v810, %v826
  %v829 = vor.u32 %v827, %v828
  %v830 = vsub.s32 4294967266, %v825
  %v831 = vadd.s32 %v830, 127
  %v832 = vshll.u32 %v831, 23
  %v833 = vor.u32 4788187, %v832
  %v834 = vand.u32 2147483647, %v833
  %v836 = vcvt.s32.f32 %v829
  %v837 = vmul.f32 %v836, %v834
  %v838 = vxor.u32 %v837, 2147483648
  %v839 = vsel %vm718, %v838, %v837
  %v840 = vsub.s32 4, %v816
  %v841 = vsel %vm718, %v840, %v816
  %v842 = vsel %vm717, %v86, %v839
  %v843 = vsel %vm717, 0, %v841
  %v844 = vmul.f32 %v842, %v842
  %v845 = vmul.f32 %v844, -0.001358992
  %v846 = vadd.f32 %v845, 0.041655596
  %v847 = vmul.f32 %v844, %v846
  %v848 = vadd.f32 %v847, -0.4999988
  %v849 = vmul.f32 %v844, %v848
  %v850 = vadd.f32 1.0, %v849
  %v851 = vmul.f32 %v842, %v842
  %v852 = vmul.f32 %v851, -0.00019511016
  %v853 = vadd.f32 %v852, 0.008332121
  %v854 = vmul.f32 %v851, %v853
  %v855 = vadd.f32 %v854, -0.16666654
  %v856 = vmul.f32 %v851, %v855
  %v857 = vadd.f32 %v856, 1.0
  %v858 = vmul.f32 %v857, %v842
  %vm859 = vweird.f32 %v86
  %v860 = vand.u32 %v843, 3
  %vm861 = vcmp.lt.s32.totalorder %v860, 2
  %vm862 = vcmp.eq.s32.totalorder %v860, 0
  %v863 = vxor.u32 %v858, 2147483648
  %v864 = vsel %vm862, %v850, %v863
  %vm865 = vcmp.eq.s32.totalorder %v860, 2
  %v866 = vxor.u32 %v850, 2147483648
  %v867 = vsel %vm865, %v866, %v858
  %v868 = vsel %vm861, %v864, %v867
  %v869 = vsel %vm859, nan, %v868
  %v870 = vand.u32 2147483647, %v87
  %vm871 = vcmp.le.f32.partialorder %v870, 0.7853982
  %vm872 = vcmp.lt.s32.totalorder %v87, 0
  %v873 = vand.u32 %v87, 2139095040
  %v874 = vshrl.u32 %v873, 23
  %v875 = vsub.s32 %v874, 127
  %v876 = vand.u32 2147483647, %v87
  %v877 = vand.u32 %v876, 8388607
  %v878 = vor.u32 %v877, 8388608
  %v879 = vsub.s32 0, %v878
  %v880 = vadd.s32 %v875, 1
  %vm881 = vcmp.gt.s32.totalorder %v880, 0
  %v882 = vsel %vm881, %v880, 0
  %v883 = vshrl.u32 %v882, 5
  %v884 = vand.u32 %v882, 31
  %v885 = vsub.s32 32, %v884
  %v886 = vshrl.u32 683565275, %v885
  %v887 = vshll.u32 683565275, %v884
  %v888 = vshrl.u32 2475754826, %v885
  %v889 = vor.u32 %v887, %v888
  %v890 = vshll.u32 2475754826, %v884
  %v891 = vshrl.u32 2131351028, %v885
  %v892 = vor.u32 %v890, %v891
  %v893 = vshll.u32 2131351028, %v884
  %v894 = vshrl.u32 2102212464, %v885
  %v895 = vor.u32 %v893, %v894
  %v896 = vshll.u32 2102212464, %v884
  %v897 = vshrl.u32 920167782, %v885
  %v898 = vor.u32 %v896, %v897
  %v899 = vshll.u32 920167782, %v884
  %v900 = vshrl.u32 1326507024, %v885
  %v901 = vor.u32 %v899, %v900
  %vm902 = vcmp.lt.s32.totalorder %v883, 1
  %vm903 = vcmp.lt.s32.totalorder %v883, 2
  %vm904 = vcmp.lt.s32.totalorder %v883, 3
  %vm905 = vcmp.lt.s32.totalorder %v883, 4
  %v906 = vsel %vm902, %v886, %v889
  %v907 = vsel %vm905, %v895, 2102212464
  %v908 = vsel %vm904, %v892, %v907
  %v909 = vsel %vm903, %v906, %v908
  %v910 = vsel %vm902, %v889, %v892
  %v911 = vsel %vm905, %v898, 920167782
  %v912 = vsel %vm904, %v895, %v911
  %v913 = vsel %vm903, %v910, %v912
  %v914 = vsel %vm902, %v892, %v895
  %v915 = vsel %vm905, %v901, 1326507024
  %v916 = vsel %vm904, %v898, %v915
  %v917 = vsel %vm903, %v914, %v916
  %v918 = vshll.u32 %v878, 8
  %v919 = vand.u32 %v918, 65535
  %v920 = vshrl.u32 %v918, 16
  %v921 = vand.u32 %v917, 65535
  %v922 = vshrl.u32 %v917, 16
  %v923 = vmul.u32 %v919, %v921
  %v924 = vmul.u32 %v919, %v922
  %v925 = vmul.u32 %v920, %v921
  %v926 = vmul.u32 %v920, %v922
  %v927 = vshll.u32 %v924, 16
  %v928 = vshrl.u32 %v924, 16
  %v929 = vshll.u32 %v925, 16
  %v930 = vshrl.u32 %v925, 16
  %vm931 = vc.u32 %v923, %v927
  %v932 = vsel %vm931, 1, 0
  %v933 = vadd.s32 %v923, %v927
  %v934 = vadd.s32 %v926, %v932
  %vm935 = vc.u32 %v933, %v929
  %v936 = vsel %vm935, 1, 0
  %v937 = vadd.s32 %v933, %v929
  %v938 = vadd.s32 %v934, %v936
  %v939 = vadd.s32 %v938, %v928
  %v940 = vadd.s32 %v939, %v930
  %v941 = vand.u32 %v918, 65535
  %v942 = vshrl.u32 %v918, 16
  %v943 = vand.u32 %v913, 65535
  %v944 = vshrl.u32 %v913, 16
  %v945 = vmul.u32 %v941, %v943
  %v946 = vmul.u32 %v941, %v944
  %v947 = vmul.u32 %v942, %v943
  %v948 = vmul.u32 %v942, %v944
  %v949 = vshll.u32 %v946, 16
  %v950 = vshrl.u32 %v946, 16
  %v951 = vshll.u32 %v947, 16
  %v952 = vshrl.u32 %v947, 16
  %vm953 = vc.u32 %v945, %v949
  %v954 = vsel %vm953, 1, 0
  %v955 = vadd.s32 %v945, %v949
  %v956 = vadd.s32 %v948, %v954
  %vm957 = vc.u32 %v955, %v951
  %v958 = vsel %vm957, 1, 0
  %v959 = vadd.s32 %v955, %v951
  %v960 = vadd.s32 %v956, %v958
  %v961 = vadd.s32 %v960, %v950
  %v962 = vadd.s32 %v961, %v952
  %v963 = vmul.u32 %v918, %v909
  %v964 = vadd.s32 %v940, %v959
  %vm965 = vc.u32 %v940, %v959
  %v966 = vadd.s32 %v962, 1
  %v967 = vsel %vm965, %v966, %v962
  %v968 = vadd.s32 %v963, %v967
  %v969 = vadd.s32 %v968, 536870912
  %v970 = vshrl.u32 %v969, 30
  %v971 = vshll.u32 %v970, 30
  %v972 = vsub.s32 %v968, %v971
  %vm973 = vcmp.lt.s32.totalorder %v972, 0
  %v974 = vsub.s32 0, %v972
  %v975 = vsel %vm973, %v974, %v972
  %v976 = vclz %v975
  %v977 = vsub.s32 %v976, 2
  %vm978 = vcmp.gt.s32.totalorder 0, %v977
  %v979 = vsel %vm978, 0, %v977
  %v980 = vsub.s32 32, %v979
  %v981 = vshll.u32 %v972, %v979
  %v982 = vshrl.u32 %v964, %v980
  %v983 = vor.u32 %v981, %v982
  %v984 = vsub.s32 4294967266, %v979
  %v985 = vadd.s32 %v984, 127
  %v986 = vshll.u32 %v985, 23
  %v987 = vor.u32 4788187, %v986
  %v988 = vand.u32 2147483647, %v987
  %v990 = vcvt.s32.f32 %v983
  %v991 = vmul.f32 %v990, %v988
  %v992 = vxor.u32 %v991, 2147483648
  %v993 = vsel %vm872, %v992, %v991
  %v994 = vsub.s32 4, %v970
  %v995 = vsel %vm872, %v994, %v970
  %v996 = vsel %vm871, %v87, %v993
  %v997 = vsel %vm871, 0, %v995
  %v998 = vmul.f32 %v996, %v996
  %v999 = vmul.f32 %v998, -0.001358992
  %v1000 = vadd.f32 %v999, 0.041655596
  %v1001 = vmul.f32 %v998, %v1000
  %v1002 = vadd.f32 %v1001, -0.4999988
  %v1003 = vmul.f32 %v998, %v1002
  %v1004 = vadd.f32 1.0, %v1003
  %v1005 = vmul.f32 %v996, %v996
  %v1006 = vmul.f32 %v1005, -0.00019511016
  %v1007 = vadd.f32 %v1006, 0.008332121
  %v1008 = vmul.f32 %v1005, %v1007
  %v1009 = vadd.f32 %v1008, -0.16666654
  %v1010 = vmul.f32 %v1005, %v1009
  %v1011 = vadd.f32 %v1010, 1.0
  %v1012 = vmul.f32 %v1011, %v996
  %vm1013 = vweird.f32 %v87
  %v1014 = vand.u32 %v997, 3
  %vm1015 = vcmp.lt.s32.totalorder %v1014, 2
  %vm1016 = vcmp.eq.s32.totalorder %v1014, 0
  %v1017 = vxor.u32 %v1012, 2147483648
  %v1018 = vsel %vm1016, %v1004, %v1017
  %vm1019 = vcmp.eq.s32.totalorder %v1014, 2
  %v1020 = vxor.u32 %v1004, 2147483648
  %v1021 = vsel %vm1019, %v1020, %v1012
  %v1022 = vsel %vm1015, %v1018, %v1021
  %v1023 = vsel %vm1013, nan, %v1022
  %v1024 = vsub.f32 1.0, %v715
  %v1025 = vsub.f32 1.0, %v869
  %v1026 = vsub.f32 1.0, %v1023
  %v1027 = vmul.f32 %v91, %v91
  %v1028 = vmul.f32 %v92, %v92
  %v1029 = vmul.f32 %v93, %v93
  %v1030 = vmul.f32 %v94, %v94
  %v1031 = vmul.f32 %v95, %v95
  %v1032 = vmul.f32 %v96, %v96
  %v1033 = vadd.f32 %v1027, %v1030
  %v1034 = vadd.f32 %v1028, %v1031
  %v1035 = vadd.f32 %v1029, %v1032
  %v1036 = vsub.f32 0.0, %v1033
  %v1037 = vsub.f32 0.0, %v1034
  %v1038 = vsub.f32 0.0, %v1035
  %v1039 = vmul.f32 %v1024, %v1036
  %v1040 = vmul.f32 %v1025, %v1037
  %v1041 = vmul.f32 %v1026, %v1038
  %1042 = vst [vmem:[#allocation2] sm:$0xff] %v1039
  %1043 = vst [vmem:[#allocation2 + $0x8] sm:$0xff] %v1040
  %1044 = vst [vmem:[#allocation2 + $0x10] sm:$0xff] %v1041
  %v1045 = vmul.f32 %v88, %v91
  %v1046 = vmul.f32 %v89, %v92
  %v1047 = vmul.f32 %v90, %v93
  %v1048 = vmul.f32 %v1024, %v1045
  %v1049 = vmul.f32 %v1025, %v1046
  %v1050 = vmul.f32 %v1026, %v1047
  %v1051 = vmul.f32 %v251, %v94
  %v1052 = vmul.f32 %v406, %v95
  %v1053 = vmul.f32 %v561, %v96
  %v1054 = vsub.f32 %v1048, %v1051
  %v1055 = vsub.f32 %v1049, %v1052
  %v1056 = vsub.f32 %v1050, %v1053
  %1057 = vst [vmem:[#allocation2 + $0x18] sm:$0xff] %v1054
  %1058 = vst [vmem:[#allocation2 + $0x20] sm:$0xff] %v1055
  %1059 = vst [vmem:[#allocation2 + $0x28] sm:$0xff] %v1056
  %v1060 = vmul.f32 %v88, %v94
  %v1061 = vmul.f32 %v89, %v95
  %v1062 = vmul.f32 %v90, %v96
  %v1063 = vmul.f32 %v1024, %v1060
  %v1064 = vmul.f32 %v1025, %v1061
  %v1065 = vmul.f32 %v1026, %v1062
  %v1066 = vmul.f32 %v251, %v91
  %v1067 = vmul.f32 %v406, %v92
  %v1068 = vmul.f32 %v561, %v93
  %v1069 = vadd.f32 %v1063, %v1066
  %v1070 = vadd.f32 %v1064, %v1067
  %v1071 = vadd.f32 %v1065, %v1068
  %1072 = vst [vmem:[#allocation2 + $0x30] sm:$0xff] %v1069
  %1073 = vst [vmem:[#allocation2 + $0x38] sm:$0xff] %v1070
  %1074 = vst [vmem:[#allocation2 + $0x40] sm:$0xff] %v1071
  %v1075 = vadd.f32 %v1048, %v1051
  %v1076 = vadd.f32 %v1049, %v1052
  %v1077 = vadd.f32 %v1050, %v1053
  %1078 = vst [vmem:[#allocation2 + $0x48] sm:$0xff] %v1075
  %1079 = vst [vmem:[#allocation2 + $0x50] sm:$0xff] %v1076
  %1080 = vst [vmem:[#allocation2 + $0x58] sm:$0xff] %v1077
  %v1081 = vmul.f32 %v88, %v88
  %v1082 = vmul.f32 %v89, %v89
  %v1083 = vmul.f32 %v90, %v90
  %v1084 = vadd.f32 %v1081, %v1030
  %v1085 = vadd.f32 %v1082, %v1031
  %v1086 = vadd.f32 %v1083, %v1032
  %v1087 = vsub.f32 0.0, %v1084
  %v1088 = vsub.f32 0.0, %v1085
  %v1089 = vsub.f32 0.0, %v1086
  %v1090 = vmul.f32 %v1024, %v1087
  %v1091 = vmul.f32 %v1025, %v1088
  %v1092 = vmul.f32 %v1026, %v1089
  %1093 = vst [vmem:[#allocation2 + $0x60] sm:$0xff] %v1090
  %1094 = vst [vmem:[#allocation2 + $0x68] sm:$0xff] %v1091
  %1095 = vst [vmem:[#allocation2 + $0x70] sm:$0xff] %v1092
  %v1096 = vmul.f32 %v91, %v94
  %v1097 = vmul.f32 %v92, %v95
  %v1098 = vmul.f32 %v93, %v96
  %v1099 = vmul.f32 %v1024, %v1096
  %v1100 = vmul.f32 %v1025, %v1097
  %v1101 = vmul.f32 %v1026, %v1098
  %v1102 = vmul.f32 %v251, %v88
  %v1103 = vmul.f32 %v406, %v89
  %v1104 = vmul.f32 %v561, %v90
  %v1105 = vsub.f32 %v1099, %v1102
  %v1106 = vsub.f32 %v1100, %v1103
  %v1107 = vsub.f32 %v1101, %v1104
  %1108 = vst [vmem:[#allocation2 + $0x78] sm:$0xff] %v1105
  %1109 = vst [vmem:[#allocation2 + $0x80] sm:$0xff] %v1106
  %1110 = vst [vmem:[#allocation2 + $0x88] sm:$0xff] %v1107
  %v1111 = vsub.f32 %v1063, %v1066
  %v1112 = vsub.f32 %v1064, %v1067
  %v1113 = vsub.f32 %v1065, %v1068
  %1114 = vst [vmem:[#allocation2 + $0x90] sm:$0xff] %v1111
  %1115 = vst [vmem:[#allocation2 + $0x98] sm:$0xff] %v1112
  %1116 = vst [vmem:[#allocation2 + $0xa0] sm:$0xff] %v1113
  %v1117 = vadd.f32 %v1099, %v1102
  %v1118 = vadd.f32 %v1100, %v1103
  %v1119 = vadd.f32 %v1101, %v1104
  %1120 = vst [vmem:[#allocation2 + $0xa8] sm:$0xff] %v1117
  %1121 = vst [vmem:[#allocation2 + $0xb0] sm:$0xff] %v1118
  %1122 = vst [vmem:[#allocation2 + $0xb8] sm:$0xff] %v1119
  %v1123 = vadd.f32 %v1081, %v1027
  %v1124 = vadd.f32 %v1082, %v1028
  %v1125 = vadd.f32 %v1083, %v1029
  %v1126 = vsub.f32 0.0, %v1123
  %v1127 = vsub.f32 0.0, %v1124
  %v1128 = vsub.f32 0.0, %v1125
  %v1129 = vmul.f32 %v1024, %v1126
  %v1130 = vmul.f32 %v1025, %v1127
  %v1131 = vmul.f32 %v1026, %v1128
  %1132 = vst [vmem:[#allocation2 + $0xc0] sm:$0xff] %v1129
  %1133 = vst [vmem:[#allocation2 + $0xc8] sm:$0xff] %v1130
  %1134 = vst [vmem:[#allocation2 + $0xd0] sm:$0xff] %v1131
  %v1135 = vld [vmem:[%s1] sm:$0xff]
  %v1136 = vld [vmem:[%s1 + $0x8] sm:$0xff]
  %v1137 = vld [vmem:[%s1 + $0x10] sm:$0xff]
  %v1138 = vld [vmem:[%s1 + $0x18] sm:$0xff]
  %v1139 = vld [vmem:[%s1 + $0x20] sm:$0xff]
  %v1140 = vld [vmem:[%s1 + $0x28] sm:$0xff]
  %v1141 = vld [vmem:[%s1 + $0x30] sm:$0xff]
  %v1142 = vld [vmem:[%s1 + $0x38] sm:$0xff]
  %v1143 = vld [vmem:[%s1 + $0x40] sm:$0xff]
  %v1144 = vld [vmem:[%s1 + $0x48] sm:$0xff]
  %v1145 = vld [vmem:[%s1 + $0x50] sm:$0xff]
  %v1146 = vld [vmem:[%s1 + $0x58] sm:$0xff]
  %v1147 = vld [vmem:[%s1 + $0x60] sm:$0xff]
  %v1148 = vld [vmem:[%s1 + $0x68] sm:$0xff]
  %v1149 = vld [vmem:[%s1 + $0x70] sm:$0xff]
  %v1150 = vld [vmem:[%s1 + $0x78] sm:$0xff]
  %v1151 = vld [vmem:[%s1 + $0x80] sm:$0xff]
  %v1152 = vld [vmem:[%s1 + $0x88] sm:$0xff]
  %v1153 = vld [vmem:[%s1 + $0x90] sm:$0xff]
  %v1154 = vld [vmem:[%s1 + $0x98] sm:$0xff]
  %v1155 = vld [vmem:[%s1 + $0xa0] sm:$0xff]
  %v1156 = vld [vmem:[%s1 + $0xa8] sm:$0xff]
  %v1157 = vld [vmem:[%s1 + $0xb0] sm:$0xff]
  %v1158 = vld [vmem:[%s1 + $0xb8] sm:$0xff]
  %v1159 = vld [vmem:[%s1 + $0xc0] sm:$0xff]
  %v1160 = vld [vmem:[%s1 + $0xc8] sm:$0xff]
  %v1161 = vld [vmem:[%s1 + $0xd0] sm:$0xff]
  %v1162 = vld [vmem:[%s1 + $0xd8] sm:$0xff]
  %v1163 = vld [vmem:[%s1 + $0xe0] sm:$0xff]
  %v1164 = vld [vmem:[%s1 + $0xe8] sm:$0xff]
  %v1165 = vld [vmem:[%s1 + $0xf0] sm:$0xff]
  %v1166 = vld [vmem:[%s1 + $0xf8] sm:$0xff]
  %v1167 = vld [vmem:[%s1 + $0x100] sm:$0xff]
  %v1168 = vld [vmem:[%s1 + $0x108] sm:$0xff]
  %v1169 = vld [vmem:[%s1 + $0x110] sm:$0xff]
  %v1170 = vld [vmem:[%s1 + $0x118] sm:$0xff]
  %v1171 = vld [vmem:[%s1 + $0x120] sm:$0xff]
  %v1172 = vld [vmem:[%s1 + $0x128] sm:$0xff]
  %v1173 = vld [vmem:[%s1 + $0x130] sm:$0xff]
  %v1174 = vld [vmem:[%s1 + $0x138] sm:$0xff]
  %v1175 = vld [vmem:[%s1 + $0x140] sm:$0xff]
  %v1176 = vld [vmem:[%s1 + $0x148] sm:$0xff]
  %v1177 = vld [vmem:[%s1 + $0x150] sm:$0xff]
  %v1178 = vld [vmem:[%s1 + $0x158] sm:$0xff]
  %v1179 = vld [vmem:[%s1 + $0x160] sm:$0xff]
  %v1180 = vld [vmem:[%s1 + $0x168] sm:$0xff]
  %v1181 = vld [vmem:[%s1 + $0x170] sm:$0xff]
  %v1182 = vld [vmem:[%s1 + $0x178] sm:$0xff]
  %v1183 = vld [vmem:[%s1 + $0x180] sm:$0xff]
  %v1184 = vld [vmem:[%s1 + $0x188] sm:$0xff]
  %v1185 = vld [vmem:[%s1 + $0x190] sm:$0xff]
  %v1186 = vld [vmem:[%s1 + $0x198] sm:$0xff]
  %v1187 = vld [vmem:[%s1 + $0x1a0] sm:$0xff]
  %v1188 = vld [vmem:[%s1 + $0x1a8] sm:$0xff]
  %v1189 = vld [vmem:[%s1 + $0x1b0] sm:$0xff]
  %v1190 = vld [vmem:[%s1 + $0x1b8] sm:$0xff]
  %v1191 = vld [vmem:[%s1 + $0x1c0] sm:$0xff]
  %v1192 = vld [vmem:[%s1 + $0x1c8] sm:$0xff]
  %v1193 = vld [vmem:[%s1 + $0x1d0] sm:$0xff]
  %v1194 = vld [vmem:[%s1 + $0x1d8] sm:$0xff]
  %v1195 = vld [vmem:[%s1 + $0x1e0] sm:$0xff]
  %v1196 = vld [vmem:[%s1 + $0x1e8] sm:$0xff]
  %v1197 = vld [vmem:[%s1 + $0x1f0] sm:$0xff]
  %v1198 = vld [vmem:[%s1 + $0x1f8] sm:$0xff]
  %v1199 = vld [vmem:[%s1 + $0x200] sm:$0xff]
  %v1200 = vld [vmem:[%s1 + $0x208] sm:$0xff]
  %v1201 = vld [vmem:[%s1 + $0x210] sm:$0xff]
  %v1202 = vld [vmem:[%s1 + $0x218] sm:$0xff]
  %v1203 = vld [vmem:[%s1 + $0x220] sm:$0xff]
  %v1204 = vld [vmem:[%s1 + $0x228] sm:$0xff]
  %v1205 = vld [vmem:[%s1 + $0x230] sm:$0xff]
  %v1206 = vld [vmem:[%s1 + $0x238] sm:$0xff]
  %v1207 = vld [vmem:[%s1 + $0x240] sm:$0xff]
  %v1208 = vld [vmem:[%s1 + $0x248] sm:$0xff]
  %v1209 = vld [vmem:[%s1 + $0x250] sm:$0xff]
  %v1210 = vld [vmem:[%s1 + $0x258] sm:$0xff]
  %v1211 = vld [vmem:[%s1 + $0x260] sm:$0xff]
  %v1212 = vld [vmem:[%s1 + $0x268] sm:$0xff]
  %v1213 = vld [vmem:[%s1 + $0x270] sm:$0xff]
  %v1214 = vld [vmem:[%s1 + $0x278] sm:$0xff]
  %v1215 = vld [vmem:[%s1 + $0x280] sm:$0xff]
  %v1216 = vld [vmem:[%s1 + $0x288] sm:$0xff]
  %v1217 = vld [vmem:[%s1 + $0x290] sm:$0xff]
  %v1218 = vld [vmem:[%s1 + $0x298] sm:$0xff]
  %v1219 = vld [vmem:[%s1 + $0x2a0] sm:$0xff]
  %v1220 = vld [vmem:[%s1 + $0x2a8] sm:$0xff]
  %v1221 = vld [vmem:[%s1 + $0x2b0] sm:$0xff]
  %v1222 = vld [vmem:[%s1 + $0x2b8] sm:$0xff]
  %v1223 = vld [vmem:[%s1 + $0x2c0] sm:$0xff]
  %v1224 = vld [vmem:[%s1 + $0x2c8] sm:$0xff]
  %v1225 = vld [vmem:[%s1 + $0x2d0] sm:$0xff]
  %v1226 = vld [vmem:[%s1 + $0x2d8] sm:$0xff]
  %v1227 = vld [vmem:[%s1 + $0x2e0] sm:$0xff]
  %v1228 = vld [vmem:[%s1 + $0x2e8] sm:$0xff]
  %v1229 = vld [vmem:[%s1 + $0x2f0] sm:$0xff]
  %v1230 = vld [vmem:[%s1 + $0x2f8] sm:$0xff]
  %v1231 = vld [vmem:[%s1 + $0x300] sm:$0xff]
  %v1232 = vld [vmem:[%s1 + $0x308] sm:$0xff]
  %v1233 = vld [vmem:[%s1 + $0x310] sm:$0xff]
  %v1234 = vld [vmem:[%s1 + $0x318] sm:$0xff]
  %v1235 = vld [vmem:[%s1 + $0x320] sm:$0xff]
  %v1236 = vld [vmem:[%s1 + $0x328] sm:$0xff]
  %v1237 = vld [vmem:[%s1 + $0x330] sm:$0xff]
  %v1238 = vld [vmem:[%s1 + $0x338] sm:$0xff]
  %v1239 = vld [vmem:[%s1 + $0x340] sm:$0xff]
  %v1240 = vld [vmem:[%s1 + $0x348] sm:$0xff]
  %v1241 = vld [vmem:[%s1 + $0x350] sm:$0xff]
  %v1242 = vld [vmem:[%s1 + $0x358] sm:$0xff]
  %v1243 = vld [vmem:[%s1 + $0x360] sm:$0xff]
  %v1244 = vld [vmem:[%s1 + $0x368] sm:$0xff]
  %v1245 = vld [vmem:[%s1 + $0x370] sm:$0xff]
  %v1246 = vld [vmem:[%s1 + $0x378] sm:$0xff]
  %v1247 = vld [vmem:[%s1 + $0x380] sm:$0xff]
  %v1248 = vld [vmem:[%s1 + $0x388] sm:$0xff]
  %v1249 = vld [vmem:[%s1 + $0x390] sm:$0xff]
  %v1250 = vld [vmem:[%s1 + $0x398] sm:$0xff]
  %v1251 = vld [vmem:[%s1 + $0x3a0] sm:$0xff]
  %v1252 = vld [vmem:[%s1 + $0x3a8] sm:$0xff]
  %v1253 = vld [vmem:[%s1 + $0x3b0] sm:$0xff]
  %v1254 = vld [vmem:[%s1 + $0x3b8] sm:$0xff]
  %v1255 = vld [vmem:[%s1 + $0x3c0] sm:$0xff]
  %v1256 = vld [vmem:[%s1 + $0x3c8] sm:$0xff]
  %v1257 = vld [vmem:[%s1 + $0x3d0] sm:$0xff]
  %v1258 = vld [vmem:[%s1 + $0x3d8] sm:$0xff]
  %v1259 = vld [vmem:[%s1 + $0x3e0] sm:$0xf]
  %v1260 = vld [vmem:[%s1 + $0x3e8] sm:$0xf]
  %v1261 = vld [vmem:[#allocation2] sm:$0xff]
  %v1262 = vld [vmem:[#allocation2 + $0x8] sm:$0xff]
  %v1263 = vld [vmem:[#allocation2 + $0x10] sm:$0xff]
  %v1264 = vld [vmem:[#allocation2 + $0x18] sm:$0xff]
  %v1265 = vld [vmem:[#allocation2 + $0x20] sm:$0xff]
  %v1266 = vld [vmem:[#allocation2 + $0x28] sm:$0xff]
  %v1267 = vld [vmem:[#allocation2 + $0x30] sm:$0xff]
  %v1268 = vld [vmem:[#allocation2 + $0x38] sm:$0xff]
  %v1269 = vld [vmem:[#allocation2 + $0x40] sm:$0xff]
  %v1270 = vld [vmem:[#allocation2 + $0x48] sm:$0xff]
  %v1271 = vld [vmem:[#allocation2 + $0x50] sm:$0xff]
  %v1272 = vld [vmem:[#allocation2 + $0x58] sm:$0xff]
  %v1273 = vld [vmem:[#allocation2 + $0x60] sm:$0xff]
  %v1274 = vld [vmem:[#allocation2 + $0x68] sm:$0xff]
  %v1275 = vld [vmem:[#allocation2 + $0x70] sm:$0xff]
  %v1276 = vld [vmem:[#allocation2 + $0x78] sm:$0xff]
  %v1277 = vld [vmem:[#allocation2 + $0x80] sm:$0xff]
  %v1278 = vld [vmem:[#allocation2 + $0x88] sm:$0xff]
  %v1279 = vld [vmem:[#allocation2 + $0x90] sm:$0xff]
  %v1280 = vld [vmem:[#allocation2 + $0x98] sm:$0xff]
  %v1281 = vld [vmem:[#allocation2 + $0xa0] sm:$0xff]
  %v1282 = vld [vmem:[#allocation2 + $0xa8] sm:$0xff]
  %v1283 = vld [vmem:[#allocation2 + $0xb0] sm:$0xff]
  %v1284 = vld [vmem:[#allocation2 + $0xb8] sm:$0xff]
  %v1285 = vld [vmem:[#allocation2 + $0xc0] sm:$0xff]
  %v1286 = vld [vmem:[#allocation2 + $0xc8] sm:$0xff]
  %v1287 = vld [vmem:[#allocation2 + $0xd0] sm:$0xff]
  %v1288 = vld [vmem:[%s2] sm:$0xff]
  %v1289 = vld [vmem:[%s2 + $0x8] sm:$0xff]
  %v1290 = vld [vmem:[%s2 + $0x10] sm:$0xff]
  %v1291 = vld [vmem:[%s2 + $0x18] sm:$0xff]
  %v1292 = vld [vmem:[%s2 + $0x20] sm:$0xff]
  %v1293 = vld [vmem:[%s2 + $0x28] sm:$0xff]
  %v1294 = vld [vmem:[%s2 + $0x30] sm:$0xff]
  %v1295 = vld [vmem:[%s2 + $0x38] sm:$0xff]
  %v1296 = vld [vmem:[%s2 + $0x40] sm:$0xff]
  %v1297 = vld [vmem:[%s2 + $0x48] sm:$0xff]
  %v1298 = vld [vmem:[%s2 + $0x50] sm:$0xff]
  %v1299 = vld [vmem:[%s2 + $0x58] sm:$0xff]
  %v1300 = vld [vmem:[%s2 + $0x60] sm:$0xff]
  %v1301 = vld [vmem:[%s2 + $0x68] sm:$0xff]
  %v1302 = vld [vmem:[%s2 + $0x70] sm:$0xff]
  %v1303 = vld [vmem:[%s2 + $0x78] sm:$0xff]
  %v1304 = vld [vmem:[%s2 + $0x80] sm:$0xff]
  %v1305 = vld [vmem:[%s2 + $0x88] sm:$0xff]
  %v1306 = vld [vmem:[%s2 + $0x90] sm:$0xff]
  %v1307 = vld [vmem:[%s2 + $0x98] sm:$0xff]
  %v1308 = vld [vmem:[%s2 + $0xa0] sm:$0xff]
  %v1309 = vld [vmem:[%s2 + $0xa8] sm:$0xff]
  %v1310 = vld [vmem:[%s2 + $0xb0] sm:$0xff]
  %v1311 = vld [vmem:[%s2 + $0xb8] sm:$0xff]
  %v1312 = vld [vmem:[%s2 + $0xc0] sm:$0xff]
  %v1313 = vld [vmem:[%s2 + $0xc8] sm:$0xff]
  %v1314 = vld [vmem:[%s2 + $0xd0] sm:$0xff]
  %v1315 = vld [vmem:[%s2 + $0xd8] sm:$0xff]
  %v1316 = vld [vmem:[%s2 + $0xe0] sm:$0xff]
  %v1317 = vld [vmem:[%s2 + $0xe8] sm:$0xff]
  %v1318 = vld [vmem:[%s2 + $0xf0] sm:$0xff]
  %v1319 = vld [vmem:[%s2 + $0xf8] sm:$0xff]
  %v1320 = vld [vmem:[%s2 + $0x100] sm:$0xff]
  %v1321 = vld [vmem:[%s2 + $0x108] sm:$0xff]
  %v1322 = vld [vmem:[%s2 + $0x110] sm:$0xff]
  %v1323 = vld [vmem:[%s2 + $0x118] sm:$0xff]
  %v1324 = vld [vmem:[%s2 + $0x120] sm:$0xff]
  %v1325 = vld [vmem:[%s2 + $0x128] sm:$0xff]
  %v1326 = vld [vmem:[%s2 + $0x130] sm:$0xff]
  %v1327 = vld [vmem:[%s2 + $0x138] sm:$0xff]
  %v1328 = vld [vmem:[%s2 + $0x140] sm:$0xff]
  %v1329 = vld [vmem:[%s2 + $0x148] sm:$0xff]
  %v1330 = vld [vmem:[%s2 + $0x150] sm:$0xff]
  %v1331 = vld [vmem:[%s2 + $0x158] sm:$0xff]
  %v1332 = vld [vmem:[%s2 + $0x160] sm:$0xff]
  %v1333 = vld [vmem:[%s2 + $0x168] sm:$0xff]
  %v1334 = vld [vmem:[%s2 + $0x170] sm:$0xff]
  %v1335 = vld [vmem:[%s2 + $0x178] sm:$0xff]
  %v1336 = vld [vmem:[%s2 + $0x180] sm:$0xff]
  %v1337 = vld [vmem:[%s2 + $0x188] sm:$0xff]
  %v1338 = vld [vmem:[%s2 + $0x190] sm:$0xff]
  %v1339 = vld [vmem:[%s2 + $0x198] sm:$0xff]
  %v1340 = vld [vmem:[%s2 + $0x1a0] sm:$0xff]
  %v1341 = vld [vmem:[%s2 + $0x1a8] sm:$0xff]
  %v1342 = vld [vmem:[%s2 + $0x1b0] sm:$0xff]
  %v1343 = vld [vmem:[%s2 + $0x1b8] sm:$0xff]
  %v1344 = vld [vmem:[%s2 + $0x1c0] sm:$0xff]
  %v1345 = vld [vmem:[%s2 + $0x1c8] sm:$0xff]
  %v1346 = vld [vmem:[%s2 + $0x1d0] sm:$0xff]
  %v1347 = vld [vmem:[%s2 + $0x1d8] sm:$0xff]
  %v1348 = vld [vmem:[%s2 + $0x1e0] sm:$0xff]
  %v1349 = vld [vmem:[%s2 + $0x1e8] sm:$0xff]
  %v1350 = vld [vmem:[%s2 + $0x1f0] sm:$0xf]
  %1352 = vset.pattern.permute.xlu0 0
  %1353 = vperm.xlu0 %1352, %v1288
  %v1354 = vpop.permute.xlu0 %1353
  %1357 = vset.pattern.permute.xlu0 0
  %1358 = vperm.xlu0 %1357, %v1289
  %v1359 = vpop.permute.xlu0 %1358
  %1362 = vset.pattern.permute.xlu0 0
  %1363 = vperm.xlu0 %1362, %v1290
  %v1364 = vpop.permute.xlu0 %1363
  %1367 = vset.pattern.permute.xlu0 0
  %1368 = vperm.xlu0 %1367, %v1291
  %v1369 = vpop.permute.xlu0 %1368
  %1372 = vset.pattern.permute.xlu0 0
  %1373 = vperm.xlu0 %1372, %v1292
  %v1374 = vpop.permute.xlu0 %1373
  %1377 = vset.pattern.permute.xlu0 0
  %1378 = vperm.xlu0 %1377, %v1293
  %v1379 = vpop.permute.xlu0 %1378
  %1382 = vset.pattern.permute.xlu0 0
  %1383 = vperm.xlu0 %1382, %v1294
  %v1384 = vpop.permute.xlu0 %1383
  %1387 = vset.pattern.permute.xlu0 0
  %1388 = vperm.xlu0 %1387, %v1295
  %v1389 = vpop.permute.xlu0 %1388
  %1392 = vset.pattern.permute.xlu0 0
  %1393 = vperm.xlu0 %1392, %v1296
  %v1394 = vpop.permute.xlu0 %1393
  %1397 = vset.pattern.permute.xlu0 0
  %1398 = vperm.xlu0 %1397, %v1297
  %v1399 = vpop.permute.xlu0 %1398
  %1402 = vset.pattern.permute.xlu0 0
  %1403 = vperm.xlu0 %1402, %v1298
  %v1404 = vpop.permute.xlu0 %1403
  %1407 = vset.pattern.permute.xlu0 0
  %1408 = vperm.xlu0 %1407, %v1299
  %v1409 = vpop.permute.xlu0 %1408
  %1412 = vset.pattern.permute.xlu0 0
  %1413 = vperm.xlu0 %1412, %v1300
  %v1414 = vpop.permute.xlu0 %1413
  %1417 = vset.pattern.permute.xlu0 0
  %1418 = vperm.xlu0 %1417, %v1301
  %v1419 = vpop.permute.xlu0 %1418
  %1422 = vset.pattern.permute.xlu0 0
  %1423 = vperm.xlu0 %1422, %v1302
  %v1424 = vpop.permute.xlu0 %1423
  %1427 = vset.pattern.permute.xlu0 0
  %1428 = vperm.xlu0 %1427, %v1303
  %v1429 = vpop.permute.xlu0 %1428
  %1432 = vset.pattern.permute.xlu0 0
  %1433 = vperm.xlu0 %1432, %v1304
  %v1434 = vpop.permute.xlu0 %1433
  %1437 = vset.pattern.permute.xlu0 0
  %1438 = vperm.xlu0 %1437, %v1305
  %v1439 = vpop.permute.xlu0 %1438
  %1442 = vset.pattern.permute.xlu0 0
  %1443 = vperm.xlu0 %1442, %v1306
  %v1444 = vpop.permute.xlu0 %1443
  %1447 = vset.pattern.permute.xlu0 0
  %1448 = vperm.xlu0 %1447, %v1307
  %v1449 = vpop.permute.xlu0 %1448
  %1452 = vset.pattern.permute.xlu0 0
  %1453 = vperm.xlu0 %1452, %v1308
  %v1454 = vpop.permute.xlu0 %1453
  %1457 = vset.pattern.permute.xlu0 0
  %1458 = vperm.xlu0 %1457, %v1309
  %v1459 = vpop.permute.xlu0 %1458
  %1462 = vset.pattern.permute.xlu0 0
  %1463 = vperm.xlu0 %1462, %v1310
  %v1464 = vpop.permute.xlu0 %1463
  %1467 = vset.pattern.permute.xlu0 0
  %1468 = vperm.xlu0 %1467, %v1311
  %v1469 = vpop.permute.xlu0 %1468
  %1472 = vset.pattern.permute.xlu0 0
  %1473 = vperm.xlu0 %1472, %v1312
  %v1474 = vpop.permute.xlu0 %1473
  %1477 = vset.pattern.permute.xlu0 0
  %1478 = vperm.xlu0 %1477, %v1313
  %v1479 = vpop.permute.xlu0 %1478
  %1482 = vset.pattern.permute.xlu0 0
  %1483 = vperm.xlu0 %1482, %v1314
  %v1484 = vpop.permute.xlu0 %1483
  %1487 = vset.pattern.permute.xlu0 0
  %1488 = vperm.xlu0 %1487, %v1315
  %v1489 = vpop.permute.xlu0 %1488
  %1492 = vset.pattern.permute.xlu0 0
  %1493 = vperm.xlu0 %1492, %v1316
  %v1494 = vpop.permute.xlu0 %1493
  %1497 = vset.pattern.permute.xlu0 0
  %1498 = vperm.xlu0 %1497, %v1317
  %v1499 = vpop.permute.xlu0 %1498
  %1502 = vset.pattern.permute.xlu0 0
  %1503 = vperm.xlu0 %1502, %v1318
  %v1504 = vpop.permute.xlu0 %1503
  %1507 = vset.pattern.permute.xlu0 0
  %1508 = vperm.xlu0 %1507, %v1319
  %v1509 = vpop.permute.xlu0 %1508
  %1512 = vset.pattern.permute.xlu0 0
  %1513 = vperm.xlu0 %1512, %v1320
  %v1514 = vpop.permute.xlu0 %1513
  %1517 = vset.pattern.permute.xlu0 0
  %1518 = vperm.xlu0 %1517, %v1321
  %v1519 = vpop.permute.xlu0 %1518
  %1522 = vset.pattern.permute.xlu0 0
  %1523 = vperm.xlu0 %1522, %v1322
  %v1524 = vpop.permute.xlu0 %1523
  %1527 = vset.pattern.permute.xlu0 0
  %1528 = vperm.xlu0 %1527, %v1323
  %v1529 = vpop.permute.xlu0 %1528
  %1532 = vset.pattern.permute.xlu0 0
  %1533 = vperm.xlu0 %1532, %v1324
  %v1534 = vpop.permute.xlu0 %1533
  %1537 = vset.pattern.permute.xlu0 0
  %1538 = vperm.xlu0 %1537, %v1325
  %v1539 = vpop.permute.xlu0 %1538
  %1542 = vset.pattern.permute.xlu0 0
  %1543 = vperm.xlu0 %1542, %v1326
  %v1544 = vpop.permute.xlu0 %1543
  %1547 = vset.pattern.permute.xlu0 0
  %1548 = vperm.xlu0 %1547, %v1327
  %v1549 = vpop.permute.xlu0 %1548
  %1552 = vset.pattern.permute.xlu0 0
  %1553 = vperm.xlu0 %1552, %v1328
  %v1554 = vpop.permute.xlu0 %1553
  %1557 = vset.pattern.permute.xlu0 0
  %1558 = vperm.xlu0 %1557, %v1329
  %v1559 = vpop.permute.xlu0 %1558
  %1562 = vset.pattern.permute.xlu0 0
  %1563 = vperm.xlu0 %1562, %v1330
  %v1564 = vpop.permute.xlu0 %1563
  %1567 = vset.pattern.permute.xlu0 0
  %1568 = vperm.xlu0 %1567, %v1331
  %v1569 = vpop.permute.xlu0 %1568
  %1572 = vset.pattern.permute.xlu0 0
  %1573 = vperm.xlu0 %1572, %v1332
  %v1574 = vpop.permute.xlu0 %1573
  %1577 = vset.pattern.permute.xlu0 0
  %1578 = vperm.xlu0 %1577, %v1333
  %v1579 = vpop.permute.xlu0 %1578
  %1582 = vset.pattern.permute.xlu0 0
  %1583 = vperm.xlu0 %1582, %v1334
  %v1584 = vpop.permute.xlu0 %1583
  %1587 = vset.pattern.permute.xlu0 0
  %1588 = vperm.xlu0 %1587, %v1335
  %v1589 = vpop.permute.xlu0 %1588
  %1592 = vset.pattern.permute.xlu0 0
  %1593 = vperm.xlu0 %1592, %v1336
  %v1594 = vpop.permute.xlu0 %1593
  %1597 = vset.pattern.permute.xlu0 0
  %1598 = vperm.xlu0 %1597, %v1337
  %v1599 = vpop.permute.xlu0 %1598
  %1602 = vset.pattern.permute.xlu0 0
  %1603 = vperm.xlu0 %1602, %v1338
  %v1604 = vpop.permute.xlu0 %1603
  %1607 = vset.pattern.permute.xlu0 0
  %1608 = vperm.xlu0 %1607, %v1339
  %v1609 = vpop.permute.xlu0 %1608
  %1612 = vset.pattern.permute.xlu0 0
  %1613 = vperm.xlu0 %1612, %v1340
  %v1614 = vpop.permute.xlu0 %1613
  %1617 = vset.pattern.permute.xlu0 0
  %1618 = vperm.xlu0 %1617, %v1341
  %v1619 = vpop.permute.xlu0 %1618
  %1622 = vset.pattern.permute.xlu0 0
  %1623 = vperm.xlu0 %1622, %v1342
  %v1624 = vpop.permute.xlu0 %1623
  %1627 = vset.pattern.permute.xlu0 0
  %1628 = vperm.xlu0 %1627, %v1343
  %v1629 = vpop.permute.xlu0 %1628
  %1632 = vset.pattern.permute.xlu0 0
  %1633 = vperm.xlu0 %1632, %v1344
  %v1634 = vpop.permute.xlu0 %1633
  %1637 = vset.pattern.permute.xlu0 0
  %1638 = vperm.xlu0 %1637, %v1345
  %v1639 = vpop.permute.xlu0 %1638
  %1642 = vset.pattern.permute.xlu0 0
  %1643 = vperm.xlu0 %1642, %v1346
  %v1644 = vpop.permute.xlu0 %1643
  %1647 = vset.pattern.permute.xlu0 0
  %1648 = vperm.xlu0 %1647, %v1347
  %v1649 = vpop.permute.xlu0 %1648
  %1652 = vset.pattern.permute.xlu0 0
  %1653 = vperm.xlu0 %1652, %v1348
  %v1654 = vpop.permute.xlu0 %1653
  %1657 = vset.pattern.permute.xlu0 0
  %1658 = vperm.xlu0 %1657, %v1349
  %v1659 = vpop.permute.xlu0 %1658
  %1662 = vset.pattern.permute.xlu0 0
  %1663 = vperm.xlu0 %1662, %v1350
  %v1664 = vpop.permute.xlu0 %1663
  %vm1666 = vcmask 719872
  %v1668 = vsel %vm1666, %v1136, 0
  %v1671 = vsel %vm1666, %v1138, 0
  %v1674 = vsel %vm1666, %v1140, 0
  %v1677 = vsel %vm1666, %v1142, 0
  %v1680 = vsel %vm1666, %v1144, 0
  %v1683 = vsel %vm1666, %v1146, 0
  %v1686 = vsel %vm1666, %v1148, 0
  %v1689 = vsel %vm1666, %v1150, 0
  %v1692 = vsel %vm1666, %v1152, 0
  %v1695 = vsel %vm1666, %v1154, 0
  %v1698 = vsel %vm1666, %v1156, 0
  %v1701 = vsel %vm1666, %v1158, 0
  %v1704 = vsel %vm1666, %v1160, 0
  %v1707 = vsel %vm1666, %v1162, 0
  %v1710 = vsel %vm1666, %v1164, 0
  %v1713 = vsel %vm1666, %v1166, 0
  %v1716 = vsel %vm1666, %v1168, 0
  %v1719 = vsel %vm1666, %v1170, 0
  %v1722 = vsel %vm1666, %v1172, 0
  %v1725 = vsel %vm1666, %v1174, 0
  %v1728 = vsel %vm1666, %v1176, 0
  %v1731 = vsel %vm1666, %v1178, 0
  %v1734 = vsel %vm1666, %v1180, 0
  %v1737 = vsel %vm1666, %v1182, 0
  %v1740 = vsel %vm1666, %v1184, 0
  %v1743 = vsel %vm1666, %v1186, 0
  %v1746 = vsel %vm1666, %v1188, 0
  %v1749 = vsel %vm1666, %v1190, 0
  %v1752 = vsel %vm1666, %v1192, 0
  %v1755 = vsel %vm1666, %v1194, 0
  %v1758 = vsel %vm1666, %v1196, 0
  %v1761 = vsel %vm1666, %v1198, 0
  %v1764 = vsel %vm1666, %v1200, 0
  %v1767 = vsel %vm1666, %v1202, 0
  %v1770 = vsel %vm1666, %v1204, 0
  %v1773 = vsel %vm1666, %v1206, 0
  %v1776 = vsel %vm1666, %v1208, 0
  %v1779 = vsel %vm1666, %v1210, 0
  %v1782 = vsel %vm1666, %v1212, 0
  %v1785 = vsel %vm1666, %v1214, 0
  %v1788 = vsel %vm1666, %v1216, 0
  %v1791 = vsel %vm1666, %v1218, 0
  %v1794 = vsel %vm1666, %v1220, 0
  %v1797 = vsel %vm1666, %v1222, 0
  %v1800 = vsel %vm1666, %v1224, 0
  %v1803 = vsel %vm1666, %v1226, 0
  %v1806 = vsel %vm1666, %v1228, 0
  %v1809 = vsel %vm1666, %v1230, 0
  %v1812 = vsel %vm1666, %v1232, 0
  %v1815 = vsel %vm1666, %v1234, 0
  %v1818 = vsel %vm1666, %v1236, 0
  %v1821 = vsel %vm1666, %v1238, 0
  %v1824 = vsel %vm1666, %v1240, 0
  %v1827 = vsel %vm1666, %v1242, 0
  %v1830 = vsel %vm1666, %v1244, 0
  %v1833 = vsel %vm1666, %v1246, 0
  %v1836 = vsel %vm1666, %v1248, 0
  %v1839 = vsel %vm1666, %v1250, 0
  %v1842 = vsel %vm1666, %v1252, 0
  %v1845 = vsel %vm1666, %v1254, 0
  %v1848 = vsel %vm1666, %v1256, 0
  %v1851 = vsel %vm1666, %v1258, 0
  %v1854 = vsel %vm1666, %v1260, 0
  %1856 = vmatpush.msra.mxu0 %v1276
  %1857 = vmatpush.msra.mxu0 %v1275
  %1858 = vmatpush.msra.mxu0 %v1274
  %1859 = vmatpush.msra.mxu0 %v1273
  %1860 = vmatpush.msra.mxu0 %v1272
  %1861 = vmatpush.msra.mxu0 %v1271
  %1862 = vmatpush.msra.mxu0 %v1270
  %1863 = vmatpush.msra.mxu0 %v1269
  %1864 = vmatpush.msra.mxu0 %v1268
  %1865 = vmatpush.msra.mxu0 %v1267
  %1866 = vmatpush.msra.mxu0 %v1266
  %1867 = vmatpush.msra.mxu0 %v1265
  %1868 = vmatpush.msra.mxu0 %v1264
  %1869 = vmatpush.msra.mxu0 %v1263
  %1870 = vmatpush.msra.mxu0 %v1262
  %1871 = vmatpush.msra.mxu0 %v1261
  %1872 = vmatmul.f32.gmra.mxu0 %v1135
  %v1873 = vpop.f32.mrf.mxu0
  %v1874 = vadd.f32 %v1354, %v1873
  %1875 = vmatmul.f32.gmra.mxu0 %v1137
  %v1876 = vpop.f32.mrf.mxu0
  %v1877 = vadd.f32 %v1359, %v1876
  %1878 = vmatmul.f32.gmra.mxu0 %v1139
  %v1879 = vpop.f32.mrf.mxu0
  %v1880 = vadd.f32 %v1364, %v1879
  %1881 = vmatmul.f32.gmra.mxu0 %v1141
  %v1882 = vpop.f32.mrf.mxu0
  %v1883 = vadd.f32 %v1369, %v1882
  %1884 = vmatmul.f32.gmra.mxu0 %v1143
  %v1885 = vpop.f32.mrf.mxu0
  %v1886 = vadd.f32 %v1374, %v1885
  %1887 = vmatmul.f32.gmra.mxu0 %v1145
  %v1888 = vpop.f32.mrf.mxu0
  %v1889 = vadd.f32 %v1379, %v1888
  %1890 = vmatmul.f32.gmra.mxu0 %v1147
  %v1891 = vpop.f32.mrf.mxu0
  %v1892 = vadd.f32 %v1384, %v1891
  %1893 = vmatmul.f32.gmra.mxu0 %v1149
  %v1894 = vpop.f32.mrf.mxu0
  %v1895 = vadd.f32 %v1389, %v1894
  %1896 = vmatmul.f32.gmra.mxu0 %v1151
  %v1897 = vpop.f32.mrf.mxu0
  %v1898 = vadd.f32 %v1394, %v1897
  %1899 = vmatmul.f32.gmra.mxu0 %v1153
  %v1900 = vpop.f32.mrf.mxu0
  %v1901 = vadd.f32 %v1399, %v1900
  %1902 = vmatmul.f32.gmra.mxu0 %v1155
  %v1903 = vpop.f32.mrf.mxu0
  %v1904 = vadd.f32 %v1404, %v1903
  %1905 = vmatmul.f32.gmra.mxu0 %v1157
  %v1906 = vpop.f32.mrf.mxu0
  %v1907 = vadd.f32 %v1409, %v1906
  %1908 = vmatmul.f32.gmra.mxu0 %v1159
  %v1909 = vpop.f32.mrf.mxu0
  %v1910 = vadd.f32 %v1414, %v1909
  %1911 = vmatmul.f32.gmra.mxu0 %v1161
  %v1912 = vpop.f32.mrf.mxu0
  %v1913 = vadd.f32 %v1419, %v1912
  %1914 = vmatmul.f32.gmra.mxu0 %v1163
  %v1915 = vpop.f32.mrf.mxu0
  %v1916 = vadd.f32 %v1424, %v1915
  %1917 = vmatmul.f32.gmra.mxu0 %v1165
  %v1918 = vpop.f32.mrf.mxu0
  %v1919 = vadd.f32 %v1429, %v1918
  %1920 = vmatmul.f32.gmra.mxu0 %v1167
  %v1921 = vpop.f32.mrf.mxu0
  %v1922 = vadd.f32 %v1434, %v1921
  %1923 = vmatmul.f32.gmra.mxu0 %v1169
  %v1924 = vpop.f32.mrf.mxu0
  %v1925 = vadd.f32 %v1439, %v1924
  %1926 = vmatmul.f32.gmra.mxu0 %v1171
  %v1927 = vpop.f32.mrf.mxu0
  %v1928 = vadd.f32 %v1444, %v1927
  %1929 = vmatmul.f32.gmra.mxu0 %v1173
  %v1930 = vpop.f32.mrf.mxu0
  %v1931 = vadd.f32 %v1449, %v1930
  %1932 = vmatmul.f32.gmra.mxu0 %v1175
  %v1933 = vpop.f32.mrf.mxu0
  %v1934 = vadd.f32 %v1454, %v1933
  %1935 = vmatmul.f32.gmra.mxu0 %v1177
  %v1936 = vpop.f32.mrf.mxu0
  %v1937 = vadd.f32 %v1459, %v1936
  %1938 = vmatmul.f32.gmra.mxu0 %v1179
  %v1939 = vpop.f32.mrf.mxu0
  %v1940 = vadd.f32 %v1464, %v1939
  %1941 = vmatmul.f32.gmra.mxu0 %v1181
  %v1942 = vpop.f32.mrf.mxu0
  %v1943 = vadd.f32 %v1469, %v1942
  %1944 = vmatmul.f32.gmra.mxu0 %v1183
  %v1945 = vpop.f32.mrf.mxu0
  %v1946 = vadd.f32 %v1474, %v1945
  %1947 = vmatmul.f32.gmra.mxu0 %v1185
  %v1948 = vpop.f32.mrf.mxu0
  %v1949 = vadd.f32 %v1479, %v1948
  %1950 = vmatmul.f32.gmra.mxu0 %v1187
  %v1951 = vpop.f32.mrf.mxu0
  %v1952 = vadd.f32 %v1484, %v1951
  %1953 = vmatmul.f32.gmra.mxu0 %v1189
  %v1954 = vpop.f32.mrf.mxu0
  %v1955 = vadd.f32 %v1489, %v1954
  %1956 = vmatmul.f32.gmra.mxu0 %v1191
  %v1957 = vpop.f32.mrf.mxu0
  %v1958 = vadd.f32 %v1494, %v1957
  %1959 = vmatmul.f32.gmra.mxu0 %v1193
  %v1960 = vpop.f32.mrf.mxu0
  %v1961 = vadd.f32 %v1499, %v1960
  %1962 = vmatmul.f32.gmra.mxu0 %v1195
  %v1963 = vpop.f32.mrf.mxu0
  %v1964 = vadd.f32 %v1504, %v1963
  %1965 = vmatmul.f32.gmra.mxu0 %v1197
  %v1966 = vpop.f32.mrf.mxu0
  %v1967 = vadd.f32 %v1509, %v1966
  %1968 = vmatmul.f32.gmra.mxu0 %v1199
  %v1969 = vpop.f32.mrf.mxu0
  %v1970 = vadd.f32 %v1514, %v1969
  %1971 = vmatmul.f32.gmra.mxu0 %v1201
  %v1972 = vpop.f32.mrf.mxu0
  %v1973 = vadd.f32 %v1519, %v1972
  %1974 = vmatmul.f32.gmra.mxu0 %v1203
  %v1975 = vpop.f32.mrf.mxu0
  %v1976 = vadd.f32 %v1524, %v1975
  %1977 = vmatmul.f32.gmra.mxu0 %v1205
  %v1978 = vpop.f32.mrf.mxu0
  %v1979 = vadd.f32 %v1529, %v1978
  %1980 = vmatmul.f32.gmra.mxu0 %v1207
  %v1981 = vpop.f32.mrf.mxu0
  %v1982 = vadd.f32 %v1534, %v1981
  %1983 = vmatmul.f32.gmra.mxu0 %v1209
  %v1984 = vpop.f32.mrf.mxu0
  %v1985 = vadd.f32 %v1539, %v1984
  %1986 = vmatmul.f32.gmra.mxu0 %v1211
  %v1987 = vpop.f32.mrf.mxu0
  %v1988 = vadd.f32 %v1544, %v1987
  %1989 = vmatmul.f32.gmra.mxu0 %v1213
  %v1990 = vpop.f32.mrf.mxu0
  %v1991 = vadd.f32 %v1549, %v1990
  %1992 = vmatmul.f32.gmra.mxu0 %v1215
  %v1993 = vpop.f32.mrf.mxu0
  %v1994 = vadd.f32 %v1554, %v1993
  %1995 = vmatmul.f32.gmra.mxu0 %v1217
  %v1996 = vpop.f32.mrf.mxu0
  %v1997 = vadd.f32 %v1559, %v1996
  %1998 = vmatmul.f32.gmra.mxu0 %v1219
  %v1999 = vpop.f32.mrf.mxu0
  %v2000 = vadd.f32 %v1564, %v1999
  %2001 = vmatmul.f32.gmra.mxu0 %v1221
  %v2002 = vpop.f32.mrf.mxu0
  %v2003 = vadd.f32 %v1569, %v2002
  %2004 = vmatmul.f32.gmra.mxu0 %v1223
  %v2005 = vpop.f32.mrf.mxu0
  %v2006 = vadd.f32 %v1574, %v2005
  %2007 = vmatmul.f32.gmra.mxu0 %v1225
  %v2008 = vpop.f32.mrf.mxu0
  %v2009 = vadd.f32 %v1579, %v2008
  %2010 = vmatmul.f32.gmra.mxu0 %v1227
  %v2011 = vpop.f32.mrf.mxu0
  %v2012 = vadd.f32 %v1584, %v2011
  %2013 = vmatmul.f32.gmra.mxu0 %v1229
  %v2014 = vpop.f32.mrf.mxu0
  %v2015 = vadd.f32 %v1589, %v2014
  %2016 = vmatmul.f32.gmra.mxu0 %v1231
  %v2017 = vpop.f32.mrf.mxu0
  %v2018 = vadd.f32 %v1594, %v2017
  %2019 = vmatmul.f32.gmra.mxu0 %v1233
  %v2020 = vpop.f32.mrf.mxu0
  %v2021 = vadd.f32 %v1599, %v2020
  %2022 = vmatmul.f32.gmra.mxu0 %v1235
  %v2023 = vpop.f32.mrf.mxu0
  %v2024 = vadd.f32 %v1604, %v2023
  %2025 = vmatmul.f32.gmra.mxu0 %v1237
  %v2026 = vpop.f32.mrf.mxu0
  %v2027 = vadd.f32 %v1609, %v2026
  %2028 = vmatmul.f32.gmra.mxu0 %v1239
  %v2029 = vpop.f32.mrf.mxu0
  %v2030 = vadd.f32 %v1614, %v2029
  %2031 = vmatmul.f32.gmra.mxu0 %v1241
  %v2032 = vpop.f32.mrf.mxu0
  %v2033 = vadd.f32 %v1619, %v2032
  %2034 = vmatmul.f32.gmra.mxu0 %v1243
  %v2035 = vpop.f32.mrf.mxu0
  %v2036 = vadd.f32 %v1624, %v2035
  %2037 = vmatmul.f32.gmra.mxu0 %v1245
  %v2038 = vpop.f32.mrf.mxu0
  %v2039 = vadd.f32 %v1629, %v2038
  %2040 = vmatmul.f32.gmra.mxu0 %v1247
  %v2041 = vpop.f32.mrf.mxu0
  %v2042 = vadd.f32 %v1634, %v2041
  %2043 = vmatmul.f32.gmra.mxu0 %v1249
  %v2044 = vpop.f32.mrf.mxu0
  %v2045 = vadd.f32 %v1639, %v2044
  %2046 = vmatmul.f32.gmra.mxu0 %v1251
  %v2047 = vpop.f32.mrf.mxu0
  %v2048 = vadd.f32 %v1644, %v2047
  %2049 = vmatmul.f32.gmra.mxu0 %v1253
  %v2050 = vpop.f32.mrf.mxu0
  %v2051 = vadd.f32 %v1649, %v2050
  %2052 = vmatmul.f32.gmra.mxu0 %v1255
  %v2053 = vpop.f32.mrf.mxu0
  %v2054 = vadd.f32 %v1654, %v2053
  %2055 = vmatmul.f32.gmra.mxu0 %v1257
  %v2056 = vpop.f32.mrf.mxu0
  %v2057 = vadd.f32 %v1659, %v2056
  %2058 = vmatmul.f32.gmra.mxu0 %v1259
  %v2059 = vpop.f32.mrf.mxu0
  %v2060 = vadd.f32 %v1664, %v2059
  %2061 = vdwg.mxu0
  %2062 = vmatpush.msra.mxu0 0.0
  %2063 = vmatpush.msra.mxu0 0.0
  %2064 = vmatpush.msra.mxu0 0.0
  %2065 = vmatpush.msra.mxu0 0.0
  %2066 = vmatpush.msra.mxu0 0.0
  %2067 = vmatpush.msra.mxu0 %v1287
  %2068 = vmatpush.msra.mxu0 %v1286
  %2069 = vmatpush.msra.mxu0 %v1285
  %2070 = vmatpush.msra.mxu0 %v1284
  %2071 = vmatpush.msra.mxu0 %v1283
  %2072 = vmatpush.msra.mxu0 %v1282
  %2073 = vmatpush.msra.mxu0 %v1281
  %2074 = vmatpush.msra.mxu0 %v1280
  %2075 = vmatpush.msra.mxu0 %v1279
  %2076 = vmatpush.msra.mxu0 %v1278
  %2077 = vmatpush.msra.mxu0 %v1277
  %2078 = vmatmul.f32.gmra.mxu0 %v1668
  %v2079 = vpop.f32.mrf.mxu0
  %v2080 = vadd.f32 %v1874, %v2079
  %2081 = vmatmul.f32.gmra.mxu0 %v1671
  %v2082 = vpop.f32.mrf.mxu0
  %v2083 = vadd.f32 %v1877, %v2082
  %2084 = vmatmul.f32.gmra.mxu0 %v1674
  %v2085 = vpop.f32.mrf.mxu0
  %v2086 = vadd.f32 %v1880, %v2085
  %2087 = vmatmul.f32.gmra.mxu0 %v1677
  %v2088 = vpop.f32.mrf.mxu0
  %v2089 = vadd.f32 %v1883, %v2088
  %2090 = vmatmul.f32.gmra.mxu0 %v1680
  %v2091 = vpop.f32.mrf.mxu0
  %v2092 = vadd.f32 %v1886, %v2091
  %2093 = vmatmul.f32.gmra.mxu0 %v1683
  %v2094 = vpop.f32.mrf.mxu0
  %v2095 = vadd.f32 %v1889, %v2094
  %2096 = vmatmul.f32.gmra.mxu0 %v1686
  %v2097 = vpop.f32.mrf.mxu0
  %v2098 = vadd.f32 %v1892, %v2097
  %2099 = vmatmul.f32.gmra.mxu0 %v1689
  %v2100 = vpop.f32.mrf.mxu0
  %v2101 = vadd.f32 %v1895, %v2100
  %2102 = vmatmul.f32.gmra.mxu0 %v1692
  %v2103 = vpop.f32.mrf.mxu0
  %v2104 = vadd.f32 %v1898, %v2103
  %2105 = vmatmul.f32.gmra.mxu0 %v1695
  %v2106 = vpop.f32.mrf.mxu0
  %v2107 = vadd.f32 %v1901, %v2106
  %2108 = vmatmul.f32.gmra.mxu0 %v1698
  %v2109 = vpop.f32.mrf.mxu0
  %v2110 = vadd.f32 %v1904, %v2109
  %2111 = vmatmul.f32.gmra.mxu0 %v1701
  %v2112 = vpop.f32.mrf.mxu0
  %v2113 = vadd.f32 %v1907, %v2112
  %2114 = vmatmul.f32.gmra.mxu0 %v1704
  %v2115 = vpop.f32.mrf.mxu0
  %v2116 = vadd.f32 %v1910, %v2115
  %2117 = vmatmul.f32.gmra.mxu0 %v1707
  %v2118 = vpop.f32.mrf.mxu0
  %v2119 = vadd.f32 %v1913, %v2118
  %2120 = vmatmul.f32.gmra.mxu0 %v1710
  %v2121 = vpop.f32.mrf.mxu0
  %v2122 = vadd.f32 %v1916, %v2121
  %2123 = vmatmul.f32.gmra.mxu0 %v1713
  %v2124 = vpop.f32.mrf.mxu0
  %v2125 = vadd.f32 %v1919, %v2124
  %2126 = vmatmul.f32.gmra.mxu0 %v1716
  %v2127 = vpop.f32.mrf.mxu0
  %v2128 = vadd.f32 %v1922, %v2127
  %2129 = vmatmul.f32.gmra.mxu0 %v1719
  %v2130 = vpop.f32.mrf.mxu0
  %v2131 = vadd.f32 %v1925, %v2130
  %2132 = vmatmul.f32.gmra.mxu0 %v1722
  %v2133 = vpop.f32.mrf.mxu0
  %v2134 = vadd.f32 %v1928, %v2133
  %2135 = vmatmul.f32.gmra.mxu0 %v1725
  %v2136 = vpop.f32.mrf.mxu0
  %v2137 = vadd.f32 %v1931, %v2136
  %2138 = vmatmul.f32.gmra.mxu0 %v1728
  %v2139 = vpop.f32.mrf.mxu0
  %v2140 = vadd.f32 %v1934, %v2139
  %2141 = vmatmul.f32.gmra.mxu0 %v1731
  %v2142 = vpop.f32.mrf.mxu0
  %v2143 = vadd.f32 %v1937, %v2142
  %2144 = vmatmul.f32.gmra.mxu0 %v1734
  %v2145 = vpop.f32.mrf.mxu0
  %v2146 = vadd.f32 %v1940, %v2145
  %2147 = vmatmul.f32.gmra.mxu0 %v1737
  %v2148 = vpop.f32.mrf.mxu0
  %v2149 = vadd.f32 %v1943, %v2148
  %2150 = vmatmul.f32.gmra.mxu0 %v1740
  %v2151 = vpop.f32.mrf.mxu0
  %v2152 = vadd.f32 %v1946, %v2151
  %2153 = vmatmul.f32.gmra.mxu0 %v1743
  %v2154 = vpop.f32.mrf.mxu0
  %v2155 = vadd.f32 %v1949, %v2154
  %2156 = vmatmul.f32.gmra.mxu0 %v1746
  %v2157 = vpop.f32.mrf.mxu0
  %v2158 = vadd.f32 %v1952, %v2157
  %2159 = vmatmul.f32.gmra.mxu0 %v1749
  %v2160 = vpop.f32.mrf.mxu0
  %v2161 = vadd.f32 %v1955, %v2160
  %2162 = vmatmul.f32.gmra.mxu0 %v1752
  %v2163 = vpop.f32.mrf.mxu0
  %v2164 = vadd.f32 %v1958, %v2163
  %2165 = vmatmul.f32.gmra.mxu0 %v1755
  %v2166 = vpop.f32.mrf.mxu0
  %v2167 = vadd.f32 %v1961, %v2166
  %2168 = vmatmul.f32.gmra.mxu0 %v1758
  %v2169 = vpop.f32.mrf.mxu0
  %v2170 = vadd.f32 %v1964, %v2169
  %2171 = vmatmul.f32.gmra.mxu0 %v1761
  %v2172 = vpop.f32.mrf.mxu0
  %v2173 = vadd.f32 %v1967, %v2172
  %2174 = vmatmul.f32.gmra.mxu0 %v1764
  %v2175 = vpop.f32.mrf.mxu0
  %v2176 = vadd.f32 %v1970, %v2175
  %2177 = vmatmul.f32.gmra.mxu0 %v1767
  %v2178 = vpop.f32.mrf.mxu0
  %v2179 = vadd.f32 %v1973, %v2178
  %2180 = vmatmul.f32.gmra.mxu0 %v1770
  %v2181 = vpop.f32.mrf.mxu0
  %v2182 = vadd.f32 %v1976, %v2181
  %2183 = vmatmul.f32.gmra.mxu0 %v1773
  %v2184 = vpop.f32.mrf.mxu0
  %v2185 = vadd.f32 %v1979, %v2184
  %2186 = vmatmul.f32.gmra.mxu0 %v1776
  %v2187 = vpop.f32.mrf.mxu0
  %v2188 = vadd.f32 %v1982, %v2187
  %2189 = vmatmul.f32.gmra.mxu0 %v1779
  %v2190 = vpop.f32.mrf.mxu0
  %v2191 = vadd.f32 %v1985, %v2190
  %2192 = vmatmul.f32.gmra.mxu0 %v1782
  %v2193 = vpop.f32.mrf.mxu0
  %v2194 = vadd.f32 %v1988, %v2193
  %2195 = vmatmul.f32.gmra.mxu0 %v1785
  %v2196 = vpop.f32.mrf.mxu0
  %v2197 = vadd.f32 %v1991, %v2196
  %2198 = vmatmul.f32.gmra.mxu0 %v1788
  %v2199 = vpop.f32.mrf.mxu0
  %v2200 = vadd.f32 %v1994, %v2199
  %2201 = vmatmul.f32.gmra.mxu0 %v1791
  %v2202 = vpop.f32.mrf.mxu0
  %v2203 = vadd.f32 %v1997, %v2202
  %2204 = vmatmul.f32.gmra.mxu0 %v1794
  %v2205 = vpop.f32.mrf.mxu0
  %v2206 = vadd.f32 %v2000, %v2205
  %2207 = vmatmul.f32.gmra.mxu0 %v1797
  %v2208 = vpop.f32.mrf.mxu0
  %v2209 = vadd.f32 %v2003, %v2208
  %2210 = vmatmul.f32.gmra.mxu0 %v1800
  %v2211 = vpop.f32.mrf.mxu0
  %v2212 = vadd.f32 %v2006, %v2211
  %2213 = vmatmul.f32.gmra.mxu0 %v1803
  %v2214 = vpop.f32.mrf.mxu0
  %v2215 = vadd.f32 %v2009, %v2214
  %2216 = vmatmul.f32.gmra.mxu0 %v1806
  %v2217 = vpop.f32.mrf.mxu0
  %v2218 = vadd.f32 %v2012, %v2217
  %2219 = vmatmul.f32.gmra.mxu0 %v1809
  %v2220 = vpop.f32.mrf.mxu0
  %v2221 = vadd.f32 %v2015, %v2220
  %2222 = vmatmul.f32.gmra.mxu0 %v1812
  %v2223 = vpop.f32.mrf.mxu0
  %v2224 = vadd.f32 %v2018, %v2223
  %2225 = vmatmul.f32.gmra.mxu0 %v1815
  %v2226 = vpop.f32.mrf.mxu0
  %v2227 = vadd.f32 %v2021, %v2226
  %2228 = vmatmul.f32.gmra.mxu0 %v1818
  %v2229 = vpop.f32.mrf.mxu0
  %v2230 = vadd.f32 %v2024, %v2229
  %2231 = vmatmul.f32.gmra.mxu0 %v1821
  %v2232 = vpop.f32.mrf.mxu0
  %v2233 = vadd.f32 %v2027, %v2232
  %2234 = vmatmul.f32.gmra.mxu0 %v1824
  %v2235 = vpop.f32.mrf.mxu0
  %v2236 = vadd.f32 %v2030, %v2235
  %2237 = vmatmul.f32.gmra.mxu0 %v1827
  %v2238 = vpop.f32.mrf.mxu0
  %v2239 = vadd.f32 %v2033, %v2238
  %2240 = vmatmul.f32.gmra.mxu0 %v1830
  %v2241 = vpop.f32.mrf.mxu0
  %v2242 = vadd.f32 %v2036, %v2241
  %2243 = vmatmul.f32.gmra.mxu0 %v1833
  %v2244 = vpop.f32.mrf.mxu0
  %v2245 = vadd.f32 %v2039, %v2244
  %2246 = vmatmul.f32.gmra.mxu0 %v1836
  %v2247 = vpop.f32.mrf.mxu0
  %v2248 = vadd.f32 %v2042, %v2247
  %2249 = vmatmul.f32.gmra.mxu0 %v1839
  %v2250 = vpop.f32.mrf.mxu0
  %v2251 = vadd.f32 %v2045, %v2250
  %2252 = vmatmul.f32.gmra.mxu0 %v1842
  %v2253 = vpop.f32.mrf.mxu0
  %v2254 = vadd.f32 %v2048, %v2253
  %2255 = vmatmul.f32.gmra.mxu0 %v1845
  %v2256 = vpop.f32.mrf.mxu0
  %v2257 = vadd.f32 %v2051, %v2256
  %2258 = vmatmul.f32.gmra.mxu0 %v1848
  %v2259 = vpop.f32.mrf.mxu0
  %v2260 = vadd.f32 %v2054, %v2259
  %2261 = vmatmul.f32.gmra.mxu0 %v1851
  %v2262 = vpop.f32.mrf.mxu0
  %v2263 = vadd.f32 %v2057, %v2262
  %2264 = vmatmul.f32.gmra.mxu0 %v1854
  %v2265 = vpop.f32.mrf.mxu0
  %v2266 = vadd.f32 %v2060, %v2265
  %2267 = vdwg.mxu0
  %v2268 = vmax.f32 %v2080, 0.0
  %v2269 = vmax.f32 %v2083, 0.0
  %v2270 = vmax.f32 %v2086, 0.0
  %v2271 = vmax.f32 %v2089, 0.0
  %v2272 = vmax.f32 %v2092, 0.0
  %v2273 = vmax.f32 %v2095, 0.0
  %v2274 = vmax.f32 %v2098, 0.0
  %v2275 = vmax.f32 %v2101, 0.0
  %v2276 = vmax.f32 %v2104, 0.0
  %v2277 = vmax.f32 %v2107, 0.0
  %v2278 = vmax.f32 %v2110, 0.0
  %v2279 = vmax.f32 %v2113, 0.0
  %v2280 = vmax.f32 %v2116, 0.0
  %v2281 = vmax.f32 %v2119, 0.0
  %v2282 = vmax.f32 %v2122, 0.0
  %v2283 = vmax.f32 %v2125, 0.0
  %v2284 = vmax.f32 %v2128, 0.0
  %v2285 = vmax.f32 %v2131, 0.0
  %v2286 = vmax.f32 %v2134, 0.0
  %v2287 = vmax.f32 %v2137, 0.0
  %v2288 = vmax.f32 %v2140, 0.0
  %v2289 = vmax.f32 %v2143, 0.0
  %v2290 = vmax.f32 %v2146, 0.0
  %v2291 = vmax.f32 %v2149, 0.0
  %v2292 = vmax.f32 %v2152, 0.0
  %v2293 = vmax.f32 %v2155, 0.0
  %v2294 = vmax.f32 %v2158, 0.0
  %v2295 = vmax.f32 %v2161, 0.0
  %v2296 = vmax.f32 %v2164, 0.0
  %v2297 = vmax.f32 %v2167, 0.0
  %v2298 = vmax.f32 %v2170, 0.0
  %v2299 = vmax.f32 %v2173, 0.0
  %v2300 = vmax.f32 %v2176, 0.0
  %v2301 = vmax.f32 %v2179, 0.0
  %v2302 = vmax.f32 %v2182, 0.0
  %v2303 = vmax.f32 %v2185, 0.0
  %v2304 = vmax.f32 %v2188, 0.0
  %v2305 = vmax.f32 %v2191, 0.0
  %v2306 = vmax.f32 %v2194, 0.0
  %v2307 = vmax.f32 %v2197, 0.0
  %v2308 = vmax.f32 %v2200, 0.0
  %v2309 = vmax.f32 %v2203, 0.0
  %v2310 = vmax.f32 %v2206, 0.0
  %v2311 = vmax.f32 %v2209, 0.0
  %v2312 = vmax.f32 %v2212, 0.0
  %v2313 = vmax.f32 %v2215, 0.0
  %v2314 = vmax.f32 %v2218, 0.0
  %v2315 = vmax.f32 %v2221, 0.0
  %v2316 = vmax.f32 %v2224, 0.0
  %v2317 = vmax.f32 %v2227, 0.0
  %v2318 = vmax.f32 %v2230, 0.0
  %v2319 = vmax.f32 %v2233, 0.0
  %v2320 = vmax.f32 %v2236, 0.0
  %v2321 = vmax.f32 %v2239, 0.0
  %v2322 = vmax.f32 %v2242, 0.0
  %v2323 = vmax.f32 %v2245, 0.0
  %v2324 = vmax.f32 %v2248, 0.0
  %v2325 = vmax.f32 %v2251, 0.0
  %v2326 = vmax.f32 %v2254, 0.0
  %v2327 = vmax.f32 %v2257, 0.0
  %v2328 = vmax.f32 %v2260, 0.0
  %v2329 = vmax.f32 %v2263, 0.0
  %v2330 = vmax.f32 %v2266, 0.0
  %v2331 = vld [vmem:[%s3] sm:$0xff]
  %v2332 = vld [vmem:[%s3 + $0x8] sm:$0xff]
  %v2333 = vld [vmem:[%s3 + $0x10] sm:$0xff]
  %v2334 = vld [vmem:[%s3 + $0x18] sm:$0xff]
  %v2335 = vld [vmem:[%s3 + $0x20] sm:$0x3]
  %v2336 = vld [vmem:[%s3 + $0x28] sm:$0x3]
  %v2337 = vld [vmem:[%s3 + $0x30] sm:$0x3]
  %v2338 = vld [vmem:[%s3 + $0x38] sm:$0x3]
  %v2339 = vld [vmem:[%s4] sm:$0xff]
  %v2340 = vld [vmem:[%s4 + $0x8] sm:$0x3]
  %2342 = vset.pattern.permute.xlu0 0
  %2343 = vperm.xlu0 %2342, %v2339
  %v2344 = vpop.permute.xlu0 %2343
  %2347 = vset.pattern.permute.xlu0 0
  %2348 = vperm.xlu0 %2347, %v2340
  %v2349 = vpop.permute.xlu0 %2348
  %vm2351 = vcmask 949248
  %v2353 = vsel %vm2351, %v2334, 0
  %v2356 = vsel %vm2351, %v2338, 0
  %vm2358 = vcmask 1043456
  %v2360 = vsel %vm2358, %v2330, 0
  %2362 = vmatpush.msra.mxu0 %v2283
  %2363 = vmatpush.msra.mxu0 %v2282
  %2364 = vmatpush.msra.mxu0 %v2281
  %2365 = vmatpush.msra.mxu0 %v2280
  %2366 = vmatpush.msra.mxu0 %v2279
  %2367 = vmatpush.msra.mxu0 %v2278
  %2368 = vmatpush.msra.mxu0 %v2277
  %2369 = vmatpush.msra.mxu0 %v2276
  %2370 = vmatpush.msra.mxu0 %v2275
  %2371 = vmatpush.msra.mxu0 %v2274
  %2372 = vmatpush.msra.mxu0 %v2273
  %2373 = vmatpush.msra.mxu0 %v2272
  %2374 = vmatpush.msra.mxu0 %v2271
  %2375 = vmatpush.msra.mxu0 %v2270
  %2376 = vmatpush.msra.mxu0 %v2269
  %2377 = vmatpush.msra.mxu0 %v2268
  %2378 = vmatmul.f32.gmra.mxu0 %v2331
  %v2379 = vpop.f32.mrf.mxu0
  %v2380 = vadd.f32 %v2344, %v2379
  %2381 = vmatmul.f32.gmra.mxu0 %v2335
  %v2382 = vpop.f32.mrf.mxu0
  %v2383 = vadd.f32 %v2349, %v2382
  %2384 = vdwg.mxu0
  %2385 = vmatpush.msra.mxu0 %v2299
  %2386 = vmatpush.msra.mxu0 %v2298
  %2387 = vmatpush.msra.mxu0 %v2297
  %2388 = vmatpush.msra.mxu0 %v2296
  %2389 = vmatpush.msra.mxu0 %v2295
  %2390 = vmatpush.msra.mxu0 %v2294
  %2391 = vmatpush.msra.mxu0 %v2293
  %2392 = vmatpush.msra.mxu0 %v2292
  %2393 = vmatpush.msra.mxu0 %v2291
  %2394 = vmatpush.msra.mxu0 %v2290
  %2395 = vmatpush.msra.mxu0 %v2289
  %2396 = vmatpush.msra.mxu0 %v2288
  %2397 = vmatpush.msra.mxu0 %v2287
  %2398 = vmatpush.msra.mxu0 %v2286
  %2399 = vmatpush.msra.mxu0 %v2285
  %2400 = vmatpush.msra.mxu0 %v2284
  %2401 = vmatmul.f32.gmra.mxu0 %v2332
  %v2402 = vpop.f32.mrf.mxu0
  %v2403 = vadd.f32 %v2380, %v2402
  %2404 = vmatmul.f32.gmra.mxu0 %v2336
  %v2405 = vpop.f32.mrf.mxu0
  %v2406 = vadd.f32 %v2383, %v2405
  %2407 = vdwg.mxu0
  %2408 = vmatpush.msra.mxu0 %v2315
  %2409 = vmatpush.msra.mxu0 %v2314
  %2410 = vmatpush.msra.mxu0 %v2313
  %2411 = vmatpush.msra.mxu0 %v2312
  %2412 = vmatpush.msra.mxu0 %v2311
  %2413 = vmatpush.msra.mxu0 %v2310
  %2414 = vmatpush.msra.mxu0 %v2309
  %2415 = vmatpush.msra.mxu0 %v2308
  %2416 = vmatpush.msra.mxu0 %v2307
  %2417 = vmatpush.msra.mxu0 %v2306
  %2418 = vmatpush.msra.mxu0 %v2305
  %2419 = vmatpush.msra.mxu0 %v2304
  %2420 = vmatpush.msra.mxu0 %v2303
  %2421 = vmatpush.msra.mxu0 %v2302
  %2422 = vmatpush.msra.mxu0 %v2301
  %2423 = vmatpush.msra.mxu0 %v2300
  %2424 = vmatmul.f32.gmra.mxu0 %v2333
  %v2425 = vpop.f32.mrf.mxu0
  %v2426 = vadd.f32 %v2403, %v2425
  %2427 = vmatmul.f32.gmra.mxu0 %v2337
  %v2428 = vpop.f32.mrf.mxu0
  %v2429 = vadd.f32 %v2406, %v2428
  %2430 = vdwg.mxu0
  %2431 = vmatpush.msra.mxu0 0.0
  %2432 = vmatpush.msra.mxu0 %v2360
  %2433 = vmatpush.msra.mxu0 %v2329
  %2434 = vmatpush.msra.mxu0 %v2328
  %2435 = vmatpush.msra.mxu0 %v2327
  %2436 = vmatpush.msra.mxu0 %v2326
  %2437 = vmatpush.msra.mxu0 %v2325
  %2438 = vmatpush.msra.mxu0 %v2324
  %2439 = vmatpush.msra.mxu0 %v2323
  %2440 = vmatpush.msra.mxu0 %v2322
  %2441 = vmatpush.msra.mxu0 %v2321
  %2442 = vmatpush.msra.mxu0 %v2320
  %2443 = vmatpush.msra.mxu0 %v2319
  %2444 = vmatpush.msra.mxu0 %v2318
  %2445 = vmatpush.msra.mxu0 %v2317
  %2446 = vmatpush.msra.mxu0 %v2316
  %2447 = vmatmul.f32.gmra.mxu0 %v2353
  %v2448 = vpop.f32.mrf.mxu0
  %v2449 = vadd.f32 %v2426, %v2448
  %2450 = vmatmul.f32.gmra.mxu0 %v2356
  %v2451 = vpop.f32.mrf.mxu0
  %v2452 = vadd.f32 %v2429, %v2451
  %2453 = vdwg.mxu0
  %2454 = vst [vmem:[%s5] sm:$0xff] %v2449
  %2455 = vst [vmem:[%s5 + $0x8] sm:$0x3] %v2452
  // Predicated region
  $region22: #{pose_encoder_10d.1} parent=0 // pred_check
    _
  $region23: #{pose_encoder_10d.1} parent=0 // pred_check_branch
    %2457 = sbr.rel (0) target = $region25
  $region24: #{pose_encoder_10d.1} parent=0 // pred_region
    _
  $region25: #{pose_encoder_10d.1} parent=0 // pred_fallthru
    _
  // Predicated region
  $region26: #{pose_encoder_10d.1} parent=0 // pred_check
    _
  $region27: #{pose_encoder_10d.1} parent=0 // pred_check_branch
    %2459 = sbr.rel (0) target = $region29
  $region28: #{pose_encoder_10d.1} parent=0 // pred_region
    _
  $region29: #{pose_encoder_10d.1} parent=0 // pred_fallthru
    _

</llo_original>
